<compile_context>
chip_gen: v7x
topology: tpu7x:2x2x1
jax: 0.10.0
libtpu: 0.0.40
codegen_flags: <defaults>
</compile_context>

<pallas_src>
import functools

import jax
import jax.numpy as jnp
from jax import lax
from jax.experimental import pallas as pl
from jax.experimental.pallas import tpu as pltpu

EPS = 1e-5  # torch.nn.LayerNorm default
_INV_SQRT2 = 0.7071067811865476


# ------------------------------ in-kernel helpers ------------------------------

def _layer_norm(x, gamma, beta):
    mean = jnp.mean(x, axis=-1, keepdims=True)
    var = jnp.mean((x - mean) ** 2, axis=-1, keepdims=True)
    return (x - mean) * lax.rsqrt(var + EPS) * gamma + beta


def _erf(x):
    # Abramowitz & Stegun 7.1.26 polynomial (|err| < 1.5e-7); exp + VALU only.
    p = 0.3275911
    a1, a2, a3, a4, a5 = (0.254829592, -0.284496736, 1.421413741,
                          -1.453152027, 1.061405429)
    ax = jnp.abs(x)
    t = 1.0 / (1.0 + p * ax)
    poly = ((((a5 * t + a4) * t + a3) * t + a2) * t + a1) * t
    y = 1.0 - poly * jnp.exp(-ax * ax)
    return jnp.where(x >= 0, y, -y)


def _gelu(x):
    # exact (erf-based) GELU, matching torch.nn.GELU default
    return 0.5 * x * (1.0 + _erf(x * _INV_SQRT2))


def _bf16(x):
    return x.astype(jnp.bfloat16)


# ------------------------------ fused multi-layer kernel ------------------------------

def moe_layers_kernel(x_ref, ln1g_ref, ln1b_ref, ln2g_ref, ln2b_ref,
                      wqkv_ref, bqkv_ref, wout_ref, bout_ref,
                      wg_ref, bg_ref, w1_ref, b1_ref, w2_ref, b2_ref,
                      expand_ref, wfc_ref, bfc_ref,
                      o_ref, act_ref,
                      *, num_heads, num_experts, k):
    layer = pl.program_id(1)
    n_layers = pl.num_programs(1)

    S, D = act_ref.shape
    H = num_heads
    hd = D // H
    E = num_experts
    scale = hd ** -0.5

    @pl.when(layer == 0)
    def _():
        act_ref[...] = x_ref[0]

    x = act_ref[...]                                              # (S, D) f32

    # ---------------- LN1 + multi-head attention + residual ----------------
    xn = _layer_norm(x, ln1g_ref[...], ln1b_ref[...])             # (S, D) f32
    # single fused QKV projection: (S, D) @ (D, 3D) — lane-dense MXU matmul
    qkv = jnp.dot(_bf16(xn), wqkv_ref[0],
                  preferred_element_type=jnp.float32) + bqkv_ref[0]   # (S, 3D) f32
    qkv_b = _bf16(qkv)

    # per-head S x S attention (tiny; the heavy projections above are batched)
    ctx_heads = []
    for h in range(H):
        qh = qkv_b[:, h * hd:(h + 1) * hd]                        # (S, hd)
        kh = qkv_b[:, D + h * hd:D + (h + 1) * hd]                # (S, hd)
        vh = qkv_b[:, 2 * D + h * hd:2 * D + (h + 1) * hd]        # (S, hd)
        sh = jnp.einsum('qd,kd->qk', qh, kh,
                        preferred_element_type=jnp.float32) * scale   # (S, S) f32
        mh = jnp.max(sh, axis=-1, keepdims=True)
        eh = jnp.exp(sh - mh)
        ph = eh * pl.reciprocal(jnp.sum(eh, axis=-1, keepdims=True), approx=True)
        ctx_heads.append(jnp.dot(_bf16(ph), vh,
                                 preferred_element_type=jnp.float32))  # (S, hd)
    ctx = jnp.concatenate(ctx_heads, axis=-1)                      # (S, D) head concat

    # fused output projection: one (S, D) @ (D, D) matmul over all heads
    attn = jnp.dot(_bf16(ctx), wout_ref[0],
                   preferred_element_type=jnp.float32) + bout_ref[0]
    x1 = x + attn                                                  # residual

    # ---------------- LN2 + top-k MoE + residual ----------------
    xn2 = _layer_norm(x1, ln2g_ref[...], ln2b_ref[...])            # (S, D) f32
    # gating kept in f32 (tiny matmul; preserves routing decisions)
    gates = jnp.dot(xn2, wg_ref[0],
                    preferred_element_type=jnp.float32) + bg_ref[0]    # (S, E)

    # iterative top-k (first-occurrence tie break) + EXACT softmax over the k logits
    iota = lax.broadcasted_iota(jnp.int32, gates.shape, 1)
    masks, vals = [], []
    g = gates
    for _ in range(k):
        mval = jnp.max(g, axis=-1, keepdims=True)
        idx = jnp.min(jnp.where(g == mval, iota, E), axis=-1, keepdims=True)
        msk = iota == idx
        masks.append(msk)
        vals.append(mval)
        g = jnp.where(msk, -jnp.inf, g)
    exps = [jnp.exp(v - vals[0]) for v in vals]
    denom = exps[0]
    for e_ in exps[1:]:
        denom = denom + e_
    w = jnp.zeros_like(gates)
    for msk, e_ in zip(masks, exps):
        w = w + msk.astype(jnp.float32) * (e_ / denom)             # (S, E) routing weights

    # ---- batched expert FFN: all experts in two lane-dense matmuls ----
    xb = _bf16(xn2)
    h1 = _gelu(jnp.dot(xb, w1_ref[0],
                       preferred_element_type=jnp.float32) + b1_ref[0])   # (S, E*HID)
    # broadcast gate weight of expert e to its HID-lane block via a tiny matmul
    gate_lanes = jnp.dot(w, expand_ref[...],
                         preferred_element_type=jnp.float32)       # (S, E*HID)
    moe = jnp.dot(_bf16(h1 * gate_lanes), w2_ref[0],
                  preferred_element_type=jnp.float32)              # (S, D)
    moe = moe + jnp.dot(w, b2_ref[0], preferred_element_type=jnp.float32)  # per-expert bias
    x2 = x1 + moe                                                  # residual
    act_ref[...] = x2

    # ---------------- final layer: mean-pool over seq + fc_out head ----------------
    @pl.when(layer == n_layers - 1)
    def _():
        pooled = jnp.mean(x2, axis=0, keepdims=True)               # (1, D) == x.mean(dim=1)
        o_ref[0] = jnp.dot(_bf16(pooled), wfc_ref[...],
                           preferred_element_type=jnp.float32) + bfc_ref[...]


# ------------------------------ wrapper ------------------------------

def moe_forward(params, x, *, num_heads, num_experts, k):
    """Full MOE forward: all layers + mean-pool + fc_out in one fused pallas_call."""
    if x.ndim == 2:                        # matches `if x.dim() == 2: x = x.unsqueeze(1)`
        x = x[:, None, :]
    B, S, D = x.shape
    L = params["wqkv"].shape[0]
    O = params["wfc"].shape[1]

    args = [x,
            params["ln1_g"], params["ln1_b"], params["ln2_g"], params["ln2_b"],
            params["wqkv"], params["bqkv"], params["wout"], params["bout"],
            params["wg"], params["bg"], params["w1"], params["b1"],
            params["w2"], params["b2"],
            params["expand"], params["wfc"], params["bfc"]]

    def const_spec(a):
        zeros = (0,) * a.ndim
        return pl.BlockSpec(a.shape, lambda b, l, _z=zeros: _z)

    def layer_spec(a):
        tail = (0,) * (a.ndim - 1)
        return pl.BlockSpec((1,) + a.shape[1:], lambda b, l, _t=tail: (l,) + _t)

    in_specs = ([pl.BlockSpec((1, S, D), lambda b, l: (b, 0, 0))]
                + [const_spec(a) for a in args[1:5]]       # shared LayerNorm params
                + [layer_spec(a) for a in args[5:15]]      # per-layer stacked weights
                + [const_spec(a) for a in args[15:]])      # expand / fc_out head

    kern = functools.partial(moe_layers_kernel, num_heads=num_heads,
                             num_experts=num_experts, k=k)
    out = pl.pallas_call(
        kern,
        out_shape=jax.ShapeDtypeStruct((B, 1, O), jnp.float32),
        grid=(B, L),                                      # batch parallel, layers serial
        in_specs=in_specs,
        out_specs=pl.BlockSpec((1, 1, O), lambda b, l: (b, 0, 0)),
        scratch_shapes=[pltpu.VMEM((S, D), jnp.float32)],  # resident activation
        compiler_params=pltpu.CompilerParams(
            dimension_semantics=("parallel", "arbitrary")),
    )(*args)
    return out.reshape(B, O)


# ------------------------------ deterministic parameter init ------------------------------

def init_params(key, *, input_dim, output_dim, hidden_dim, num_layers,
                num_experts, num_heads):
    D, O, HID, E, L = input_dim, output_dim, hidden_dim, num_experts, num_layers
    assert D % num_heads == 0
    EH = E * HID
    keys = iter(jax.random.split(key, 16))

    def rnd(shape, scl):
        return jax.random.normal(next(keys), shape, jnp.float32) * scl

    params = dict(
        # LayerNorms are shared across layers in the reference module
        ln1_g=jnp.ones((1, D), jnp.float32), ln1_b=jnp.zeros((1, D), jnp.float32),
        ln2_g=jnp.ones((1, D), jnp.float32), ln2_b=jnp.zeros((1, D), jnp.float32),
        # per-layer stacked weights (leading layer axis)
        wqkv=rnd((L, D, 3 * D), D ** -0.5).astype(jnp.bfloat16),
        bqkv=rnd((L, 1, 3 * D), 0.02),
        wout=rnd((L, D, D), D ** -0.5).astype(jnp.bfloat16),
        bout=rnd((L, 1, D), 0.02),
        wg=rnd((L, D, E), D ** -0.5),          # gate kept f32 (routing fidelity)
        bg=rnd((L, 1, E), 0.02),
        w1=rnd((L, D, EH), D ** -0.5).astype(jnp.bfloat16),     # experts stacked on columns
        b1=rnd((L, 1, EH), 0.02),
        w2=rnd((L, EH, D), HID ** -0.5).astype(jnp.bfloat16),   # experts stacked on rows
        b2=rnd((L, E, D), 0.02),
        # fc_out head
        wfc=rnd((D, O), D ** -0.5).astype(jnp.bfloat16),
        bfc=rnd((1, O), 0.02),
        # expand[e, e*HID:(e+1)*HID] = 1 : broadcasts gate weights to expert lane blocks
        expand=jnp.repeat(jnp.eye(E, dtype=jnp.float32), HID, axis=1),
    )
    return params


# ------------------------------ main ------------------------------

if __name__ == "__main__":
    # small config: input_dim=32, output_dim=10, num_heads=4, hidden_dim=32,
    # num_layers=2 (exercises the layer-fused grid), num_experts=4, k=2
    B, S, D, O = 2, 8, 32, 10
    NUM_HEADS, HIDDEN, NUM_LAYERS, NUM_EXPERTS, K = 4, 32, 2, 4, 2

    root = jax.random.PRNGKey(0)
    k_param, k_x = jax.random.split(root)

    params = init_params(k_param, input_dim=D, output_dim=O, hidden_dim=HIDDEN,
                         num_layers=NUM_LAYERS, num_experts=NUM_EXPERTS,
                         num_heads=NUM_HEADS)
    x = jax.random.normal(k_x, (B, S, D), jnp.float32)

    fwd = jax.jit(functools.partial(moe_forward, num_heads=NUM_HEADS,
                                    num_experts=NUM_EXPERTS, k=K))
    out = fwd(params, x)
    jax.block_until_ready(out)

    assert out.shape == (B, O), out.shape
    assert bool(jnp.all(jnp.isfinite(out)))
    print("KERNEL_OK")
</pallas_src>

<mosaic_0001>
module attributes {stable_mosaic.version = 11 : i64} {
  func.func @moe_layers_kernel(%arg0: i32, %arg1: i32, %arg2: memref<1x8x32xf32, #tpu.memory_space<vmem>>, %arg3: memref<1x32xf32, #tpu.memory_space<vmem>>, %arg4: memref<1x32xf32, #tpu.memory_space<vmem>>, %arg5: memref<1x32xf32, #tpu.memory_space<vmem>>, %arg6: memref<1x32xf32, #tpu.memory_space<vmem>>, %arg7: memref<1x32x96xbf16, #tpu.memory_space<vmem>>, %arg8: memref<1x1x96xf32, #tpu.memory_space<vmem>>, %arg9: memref<1x32x32xbf16, #tpu.memory_space<vmem>>, %arg10: memref<1x1x32xf32, #tpu.memory_space<vmem>>, %arg11: memref<1x32x4xf32, #tpu.memory_space<vmem>>, %arg12: memref<1x1x4xf32, #tpu.memory_space<vmem>>, %arg13: memref<1x32x128xbf16, #tpu.memory_space<vmem>>, %arg14: memref<1x1x128xf32, #tpu.memory_space<vmem>>, %arg15: memref<1x128x32xbf16, #tpu.memory_space<vmem>>, %arg16: memref<1x4x32xf32, #tpu.memory_space<vmem>>, %arg17: memref<4x128xf32, #tpu.memory_space<vmem>>, %arg18: memref<32x10xbf16, #tpu.memory_space<vmem>>, %arg19: memref<1x10xf32, #tpu.memory_space<vmem>>, %arg20: memref<1x1x10xf32, #tpu.memory_space<vmem>>, %arg21: memref<8x32xf32, #tpu.memory_space<vmem>>) attributes {dimension_semantics = [#tpu.dimension_semantics<parallel>, #tpu.dimension_semantics<arbitrary>], iteration_bounds = array<i64: 2, 2>, scalar_prefetch = 0 : i64, scratch_operands = 1 : i64, tpu.core_type = #tpu.core_type<tc>, window_params = [{transform_indices = @transform_0, window_bounds = array<i64: 1, 8, 32>}, {pipeline_mode = #tpu.pipeline_mode<synchronous>, transform_indices = @transform_1, window_bounds = array<i64: 1, 32>}, {pipeline_mode = #tpu.pipeline_mode<synchronous>, transform_indices = @transform_2, window_bounds = array<i64: 1, 32>}, {pipeline_mode = #tpu.pipeline_mode<synchronous>, transform_indices = @transform_3, window_bounds = array<i64: 1, 32>}, {pipeline_mode = #tpu.pipeline_mode<synchronous>, transform_indices = @transform_4, window_bounds = array<i64: 1, 32>}, {transform_indices = @transform_5, window_bounds = array<i64: 1, 32, 96>}, {transform_indices = @transform_6, window_bounds = array<i64: 1, 1, 96>}, {transform_indices = @transform_7, window_bounds = array<i64: 1, 32, 32>}, {transform_indices = @transform_8, window_bounds = array<i64: 1, 1, 32>}, {transform_indices = @transform_9, window_bounds = array<i64: 1, 32, 4>}, {transform_indices = @transform_10, window_bounds = array<i64: 1, 1, 4>}, {transform_indices = @transform_11, window_bounds = array<i64: 1, 32, 128>}, {transform_indices = @transform_12, window_bounds = array<i64: 1, 1, 128>}, {transform_indices = @transform_13, window_bounds = array<i64: 1, 128, 32>}, {transform_indices = @transform_14, window_bounds = array<i64: 1, 4, 32>}, {pipeline_mode = #tpu.pipeline_mode<synchronous>, transform_indices = @transform_15, window_bounds = array<i64: 4, 128>}, {pipeline_mode = #tpu.pipeline_mode<synchronous>, transform_indices = @transform_16, window_bounds = array<i64: 32, 10>}, {pipeline_mode = #tpu.pipeline_mode<synchronous>, transform_indices = @transform_17, window_bounds = array<i64: 1, 10>}, {transform_indices = @transform_18, window_bounds = array<i64: 1, 1, 10>}]} {
    %c0_i32 = arith.constant 0 : i32
    %0 = arith.cmpi eq, %arg1, %c0_i32 : i32
    %1 = arith.extui %0 : i1 to i32
    %c0_i32_0 = arith.constant 0 : i32
    %2 = arith.cmpi ne, %1, %c0_i32_0 : i32
    scf.if %2 {
      %c0_103 = arith.constant 0 : index
      %c0_104 = arith.constant 0 : index
      %c0_105 = arith.constant 0 : index
      %255 = vector.load %arg2[%c0_103, %c0_104, %c0_105] : memref<1x8x32xf32, #tpu.memory_space<vmem>>, vector<1x8x32xf32>
      %256 = vector.shape_cast %255 : vector<1x8x32xf32> to vector<8x32xf32>
      %c0_106 = arith.constant 0 : index
      %c0_107 = arith.constant 0 : index
      %257 = vector.load %arg21[%c0_106, %c0_107] : memref<8x32xf32, #tpu.memory_space<vmem>>, vector<8x32xf32>
      tpu.vector_store %arg21[%c0_106, %c0_107], %256 {strides = array<i32>} : memref<8x32xf32, #tpu.memory_space<vmem>>, vector<8x32xf32>,
    } else {
    }
    %c0 = arith.constant 0 : index
    %c0_1 = arith.constant 0 : index
    %3 = vector.load %arg21[%c0, %c0_1] : memref<8x32xf32, #tpu.memory_space<vmem>>, vector<8x32xf32>
    %c0_2 = arith.constant 0 : index
    %c0_3 = arith.constant 0 : index
    %4 = vector.load %arg3[%c0_2, %c0_3] : memref<1x32xf32, #tpu.memory_space<vmem>>, vector<1x32xf32>
    %c0_4 = arith.constant 0 : index
    %c0_5 = arith.constant 0 : index
    %5 = vector.load %arg4[%c0_4, %c0_5] : memref<1x32xf32, #tpu.memory_space<vmem>>, vector<1x32xf32>
    %cst = arith.constant dense<0.000000e+00> : vector<8xf32>
    %6 = vector.multi_reduction <add>, %3, %cst [1] : vector<8x32xf32> to vector<8xf32>
    %7 = vector.shape_cast %6 : vector<8xf32> to vector<8x1xf32>
    %cst_6 = arith.constant 3.200000e+01 : f32
    %8 = vector.broadcast %cst_6 : f32 to vector<8x1xf32>
    %9 = arith.divf %7, %8 : vector<8x1xf32>
    %10 = vector.broadcast %9 : vector<8x1xf32> to vector<8x32xf32>
    %11 = arith.subf %3, %10 : vector<8x32xf32>
    %12 = arith.mulf %11, %11 : vector<8x32xf32>
    %cst_7 = arith.constant dense<0.000000e+00> : vector<8xf32>
    %13 = vector.multi_reduction <add>, %12, %cst_7 [1] : vector<8x32xf32> to vector<8xf32>
    %14 = vector.shape_cast %13 : vector<8xf32> to vector<8x1xf32>
    %cst_8 = arith.constant 3.200000e+01 : f32
    %15 = vector.broadcast %cst_8 : f32 to vector<8x1xf32>
    %16 = arith.divf %14, %15 : vector<8x1xf32>
    %17 = vector.broadcast %9 : vector<8x1xf32> to vector<8x32xf32>
    %18 = arith.subf %3, %17 : vector<8x32xf32>
    %cst_9 = arith.constant 9.99999974E-6 : f32
    %19 = vector.broadcast %cst_9 : f32 to vector<8x1xf32>
    %20 = arith.addf %16, %19 : vector<8x1xf32>
    %21 = math.rsqrt %20 : vector<8x1xf32>
    %22 = vector.broadcast %21 : vector<8x1xf32> to vector<8x32xf32>
    %23 = arith.mulf %18, %22 : vector<8x32xf32>
    %24 = vector.broadcast %4 : vector<1x32xf32> to vector<8x32xf32>
    %25 = arith.mulf %23, %24 : vector<8x32xf32>
    %26 = vector.broadcast %5 : vector<1x32xf32> to vector<8x32xf32>
    %27 = arith.addf %25, %26 : vector<8x32xf32>
    %28 = arith.truncf %27 : vector<8x32xf32> to vector<8x32xbf16>
    %c0_10 = arith.constant 0 : index
    %c0_11 = arith.constant 0 : index
    %c0_12 = arith.constant 0 : index
    %29 = vector.load %arg7[%c0_10, %c0_11, %c0_12] : memref<1x32x96xbf16, #tpu.memory_space<vmem>>, vector<1x32x96xbf16>
    %30 = vector.shape_cast %29 : vector<1x32x96xbf16> to vector<32x96xbf16>
    %cst_13 = arith.constant dense<0.000000e+00> : vector<8x96xf32>
    %31 = tpu.matmul %28, %30, %cst_13 {dimension_numbers = #tpu.dot_dimension_numbers<[1], [0], [0], [1], [0, 0, 1, 1], [], []>} : vector<8x32xbf16>, vector<32x96xbf16>, vector<8x96xf32> -> vector<8x96xf32>
    %c0_14 = arith.constant 0 : index
    %c0_15 = arith.constant 0 : index
    %c0_16 = arith.constant 0 : index
    %32 = vector.load %arg8[%c0_14, %c0_15, %c0_16] : memref<1x1x96xf32, #tpu.memory_space<vmem>>, vector<1x1x96xf32>
    %33 = vector.shape_cast %32 : vector<1x1x96xf32> to vector<1x96xf32>
    %34 = vector.broadcast %33 : vector<1x96xf32> to vector<8x96xf32>
    %35 = arith.addf %31, %34 : vector<8x96xf32>
    %36 = arith.truncf %35 : vector<8x96xf32> to vector<8x96xbf16>
    %37 = vector.extract_strided_slice %36 {offsets = [0, 0], sizes = [8, 8], strides = [1, 1]} : vector<8x96xbf16> to vector<8x8xbf16>
    %38 = vector.extract_strided_slice %36 {offsets = [0, 32], sizes = [8, 8], strides = [1, 1]} : vector<8x96xbf16> to vector<8x8xbf16>
    %39 = vector.extract_strided_slice %36 {offsets = [0, 64], sizes = [8, 8], strides = [1, 1]} : vector<8x96xbf16> to vector<8x8xbf16>
    "tpu.trace_start"() <{level = 10 : i32, message = "qd,kd->qk"}> : () -> ()
    %cst_17 = arith.constant dense<0.000000e+00> : vector<8x8xf32>
    %40 = tpu.matmul %37, %38, %cst_17 {dimension_numbers = #tpu.dot_dimension_numbers<[1], [1], [0], [0], [0, 0, 1, 0], [], []>} : vector<8x8xbf16>, vector<8x8xbf16>, vector<8x8xf32> -> vector<8x8xf32>
    "tpu.trace_stop"() : () -> ()
    %cst_18 = arith.constant 0.353553385 : f32
    %41 = vector.broadcast %cst_18 : f32 to vector<8x8xf32>
    %42 = arith.mulf %40, %41 : vector<8x8xf32>
    %cst_19 = arith.constant dense<0xFF800000> : vector<8xf32>
    %43 = vector.multi_reduction <maximumf>, %42, %cst_19 [1] : vector<8x8xf32> to vector<8xf32>
    %44 = vector.shape_cast %43 : vector<8xf32> to vector<8x1xf32>
    %45 = vector.broadcast %44 : vector<8x1xf32> to vector<8x8xf32>
    %46 = arith.subf %42, %45 : vector<8x8xf32>
    %47 = math.exp %46 : vector<8x8xf32>
    %cst_20 = arith.constant dense<0.000000e+00> : vector<8xf32>
    %48 = vector.multi_reduction <add>, %47, %cst_20 [1] : vector<8x8xf32> to vector<8xf32>
    %49 = vector.shape_cast %48 : vector<8xf32> to vector<8x1xf32>
    %50 = tpu.reciprocal %49 {approx = true} : vector<8x1xf32> -> vector<8x1xf32>
    %51 = vector.broadcast %50 : vector<8x1xf32> to vector<8x8xf32>
    %52 = arith.mulf %47, %51 : vector<8x8xf32>
    %53 = arith.truncf %52 : vector<8x8xf32> to vector<8x8xbf16>
    %cst_21 = arith.constant dense<0.000000e+00> : vector<8x8xf32>
    %54 = tpu.matmul %53, %39, %cst_21 {dimension_numbers = #tpu.dot_dimension_numbers<[1], [0], [0], [1], [0, 0, 1, 1], [], []>} : vector<8x8xbf16>, vector<8x8xbf16>, vector<8x8xf32> -> vector<8x8xf32>
    %55 = vector.extract_strided_slice %36 {offsets = [0, 8], sizes = [8, 8], strides = [1, 1]} : vector<8x96xbf16> to vector<8x8xbf16>
    %56 = vector.extract_strided_slice %36 {offsets = [0, 40], sizes = [8, 8], strides = [1, 1]} : vector<8x96xbf16> to vector<8x8xbf16>
    %57 = vector.extract_strided_slice %36 {offsets = [0, 72], sizes = [8, 8], strides = [1, 1]} : vector<8x96xbf16> to vector<8x8xbf16>
    "tpu.trace_start"() <{level = 10 : i32, message = "qd,kd->qk"}> : () -> ()
    %cst_22 = arith.constant dense<0.000000e+00> : vector<8x8xf32>
    %58 = tpu.matmul %55, %56, %cst_22 {dimension_numbers = #tpu.dot_dimension_numbers<[1], [1], [0], [0], [0, 0, 1, 0], [], []>} : vector<8x8xbf16>, vector<8x8xbf16>, vector<8x8xf32> -> vector<8x8xf32>
    "tpu.trace_stop"() : () -> ()
    %cst_23 = arith.constant 0.353553385 : f32
    %59 = vector.broadcast %cst_23 : f32 to vector<8x8xf32>
    %60 = arith.mulf %58, %59 : vector<8x8xf32>
    %cst_24 = arith.constant dense<0xFF800000> : vector<8xf32>
    %61 = vector.multi_reduction <maximumf>, %60, %cst_24 [1] : vector<8x8xf32> to vector<8xf32>
    %62 = vector.shape_cast %61 : vector<8xf32> to vector<8x1xf32>
    %63 = vector.broadcast %62 : vector<8x1xf32> to vector<8x8xf32>
    %64 = arith.subf %60, %63 : vector<8x8xf32>
    %65 = math.exp %64 : vector<8x8xf32>
    %cst_25 = arith.constant dense<0.000000e+00> : vector<8xf32>
    %66 = vector.multi_reduction <add>, %65, %cst_25 [1] : vector<8x8xf32> to vector<8xf32>
    %67 = vector.shape_cast %66 : vector<8xf32> to vector<8x1xf32>
    %68 = tpu.reciprocal %67 {approx = true} : vector<8x1xf32> -> vector<8x1xf32>
    %69 = vector.broadcast %68 : vector<8x1xf32> to vector<8x8xf32>
    %70 = arith.mulf %65, %69 : vector<8x8xf32>
    %71 = arith.truncf %70 : vector<8x8xf32> to vector<8x8xbf16>
    %cst_26 = arith.constant dense<0.000000e+00> : vector<8x8xf32>
    %72 = tpu.matmul %71, %57, %cst_26 {dimension_numbers = #tpu.dot_dimension_numbers<[1], [0], [0], [1], [0, 0, 1, 1], [], []>} : vector<8x8xbf16>, vector<8x8xbf16>, vector<8x8xf32> -> vector<8x8xf32>
    %73 = vector.extract_strided_slice %36 {offsets = [0, 16], sizes = [8, 8], strides = [1, 1]} : vector<8x96xbf16> to vector<8x8xbf16>
    %74 = vector.extract_strided_slice %36 {offsets = [0, 48], sizes = [8, 8], strides = [1, 1]} : vector<8x96xbf16> to vector<8x8xbf16>
    %75 = vector.extract_strided_slice %36 {offsets = [0, 80], sizes = [8, 8], strides = [1, 1]} : vector<8x96xbf16> to vector<8x8xbf16>
    "tpu.trace_start"() <{level = 10 : i32, message = "qd,kd->qk"}> : () -> ()
    %cst_27 = arith.constant dense<0.000000e+00> : vector<8x8xf32>
    %76 = tpu.matmul %73, %74, %cst_27 {dimension_numbers = #tpu.dot_dimension_numbers<[1], [1], [0], [0], [0, 0, 1, 0], [], []>} : vector<8x8xbf16>, vector<8x8xbf16>, vector<8x8xf32> -> vector<8x8xf32>
    "tpu.trace_stop"() : () -> ()
    %cst_28 = arith.constant 0.353553385 : f32
    %77 = vector.broadcast %cst_28 : f32 to vector<8x8xf32>
    %78 = arith.mulf %76, %77 : vector<8x8xf32>
    %cst_29 = arith.constant dense<0xFF800000> : vector<8xf32>
    %79 = vector.multi_reduction <maximumf>, %78, %cst_29 [1] : vector<8x8xf32> to vector<8xf32>
    %80 = vector.shape_cast %79 : vector<8xf32> to vector<8x1xf32>
    %81 = vector.broadcast %80 : vector<8x1xf32> to vector<8x8xf32>
    %82 = arith.subf %78, %81 : vector<8x8xf32>
    %83 = math.exp %82 : vector<8x8xf32>
    %cst_30 = arith.constant dense<0.000000e+00> : vector<8xf32>
    %84 = vector.multi_reduction <add>, %83, %cst_30 [1] : vector<8x8xf32> to vector<8xf32>
    %85 = vector.shape_cast %84 : vector<8xf32> to vector<8x1xf32>
    %86 = tpu.reciprocal %85 {approx = true} : vector<8x1xf32> -> vector<8x1xf32>
    %87 = vector.broadcast %86 : vector<8x1xf32> to vector<8x8xf32>
    %88 = arith.mulf %83, %87 : vector<8x8xf32>
    %89 = arith.truncf %88 : vector<8x8xf32> to vector<8x8xbf16>
    %cst_31 = arith.constant dense<0.000000e+00> : vector<8x8xf32>
    %90 = tpu.matmul %89, %75, %cst_31 {dimension_numbers = #tpu.dot_dimension_numbers<[1], [0], [0], [1], [0, 0, 1, 1], [], []>} : vector<8x8xbf16>, vector<8x8xbf16>, vector<8x8xf32> -> vector<8x8xf32>
    %91 = vector.extract_strided_slice %36 {offsets = [0, 24], sizes = [8, 8], strides = [1, 1]} : vector<8x96xbf16> to vector<8x8xbf16>
    %92 = vector.extract_strided_slice %36 {offsets = [0, 56], sizes = [8, 8], strides = [1, 1]} : vector<8x96xbf16> to vector<8x8xbf16>
    %93 = vector.extract_strided_slice %36 {offsets = [0, 88], sizes = [8, 8], strides = [1, 1]} : vector<8x96xbf16> to vector<8x8xbf16>
    "tpu.trace_start"() <{level = 10 : i32, message = "qd,kd->qk"}> : () -> ()
    %cst_32 = arith.constant dense<0.000000e+00> : vector<8x8xf32>
    %94 = tpu.matmul %91, %92, %cst_32 {dimension_numbers = #tpu.dot_dimension_numbers<[1], [1], [0], [0], [0, 0, 1, 0], [], []>} : vector<8x8xbf16>, vector<8x8xbf16>, vector<8x8xf32> -> vector<8x8xf32>
    "tpu.trace_stop"() : () -> ()
    %cst_33 = arith.constant 0.353553385 : f32
    %95 = vector.broadcast %cst_33 : f32 to vector<8x8xf32>
    %96 = arith.mulf %94, %95 : vector<8x8xf32>
    %cst_34 = arith.constant dense<0xFF800000> : vector<8xf32>
    %97 = vector.multi_reduction <maximumf>, %96, %cst_34 [1] : vector<8x8xf32> to vector<8xf32>
    %98 = vector.shape_cast %97 : vector<8xf32> to vector<8x1xf32>
    %99 = vector.broadcast %98 : vector<8x1xf32> to vector<8x8xf32>
    %100 = arith.subf %96, %99 : vector<8x8xf32>
    %101 = math.exp %100 : vector<8x8xf32>
    %cst_35 = arith.constant dense<0.000000e+00> : vector<8xf32>
    %102 = vector.multi_reduction <add>, %101, %cst_35 [1] : vector<8x8xf32> to vector<8xf32>
    %103 = vector.shape_cast %102 : vector<8xf32> to vector<8x1xf32>
    %104 = tpu.reciprocal %103 {approx = true} : vector<8x1xf32> -> vector<8x1xf32>
    %105 = vector.broadcast %104 : vector<8x1xf32> to vector<8x8xf32>
    %106 = arith.mulf %101, %105 : vector<8x8xf32>
    %107 = arith.truncf %106 : vector<8x8xf32> to vector<8x8xbf16>
    %cst_36 = arith.constant dense<0.000000e+00> : vector<8x8xf32>
    %108 = tpu.matmul %107, %93, %cst_36 {dimension_numbers = #tpu.dot_dimension_numbers<[1], [0], [0], [1], [0, 0, 1, 1], [], []>} : vector<8x8xbf16>, vector<8x8xbf16>, vector<8x8xf32> -> vector<8x8xf32>
    %109 = tpu.concatenate %54, %72, %90, %108 in 1 : vector<8x8xf32>, vector<8x8xf32>, vector<8x8xf32>, vector<8x8xf32> -> vector<8x32xf32>
    %110 = arith.truncf %109 : vector<8x32xf32> to vector<8x32xbf16>
    %c0_37 = arith.constant 0 : index
    %c0_38 = arith.constant 0 : index
    %c0_39 = arith.constant 0 : index
    %111 = vector.load %arg9[%c0_37, %c0_38, %c0_39] : memref<1x32x32xbf16, #tpu.memory_space<vmem>>, vector<1x32x32xbf16>
    %112 = vector.shape_cast %111 : vector<1x32x32xbf16> to vector<32x32xbf16>
    %cst_40 = arith.constant dense<0.000000e+00> : vector<8x32xf32>
    %113 = tpu.matmul %110, %112, %cst_40 {dimension_numbers = #tpu.dot_dimension_numbers<[1], [0], [0], [1], [0, 0, 1, 1], [], []>} : vector<8x32xbf16>, vector<32x32xbf16>, vector<8x32xf32> -> vector<8x32xf32>
    %c0_41 = arith.constant 0 : index
    %c0_42 = arith.constant 0 : index
    %c0_43 = arith.constant 0 : index
    %114 = vector.load %arg10[%c0_41, %c0_42, %c0_43] : memref<1x1x32xf32, #tpu.memory_space<vmem>>, vector<1x1x32xf32>
    %115 = vector.shape_cast %114 : vector<1x1x32xf32> to vector<1x32xf32>
    %116 = vector.broadcast %115 : vector<1x32xf32> to vector<8x32xf32>
    %117 = arith.addf %113, %116 : vector<8x32xf32>
    %118 = arith.addf %3, %117 : vector<8x32xf32>
    %c0_44 = arith.constant 0 : index
    %c0_45 = arith.constant 0 : index
    %119 = vector.load %arg5[%c0_44, %c0_45] : memref<1x32xf32, #tpu.memory_space<vmem>>, vector<1x32xf32>
    %c0_46 = arith.constant 0 : index
    %c0_47 = arith.constant 0 : index
    %120 = vector.load %arg6[%c0_46, %c0_47] : memref<1x32xf32, #tpu.memory_space<vmem>>, vector<1x32xf32>
    %cst_48 = arith.constant dense<0.000000e+00> : vector<8xf32>
    %121 = vector.multi_reduction <add>, %118, %cst_48 [1] : vector<8x32xf32> to vector<8xf32>
    %122 = vector.shape_cast %121 : vector<8xf32> to vector<8x1xf32>
    %cst_49 = arith.constant 3.200000e+01 : f32
    %123 = vector.broadcast %cst_49 : f32 to vector<8x1xf32>
    %124 = arith.divf %122, %123 : vector<8x1xf32>
    %125 = vector.broadcast %124 : vector<8x1xf32> to vector<8x32xf32>
    %126 = arith.subf %118, %125 : vector<8x32xf32>
    %127 = arith.mulf %126, %126 : vector<8x32xf32>
    %cst_50 = arith.constant dense<0.000000e+00> : vector<8xf32>
    %128 = vector.multi_reduction <add>, %127, %cst_50 [1] : vector<8x32xf32> to vector<8xf32>
    %129 = vector.shape_cast %128 : vector<8xf32> to vector<8x1xf32>
    %cst_51 = arith.constant 3.200000e+01 : f32
    %130 = vector.broadcast %cst_51 : f32 to vector<8x1xf32>
    %131 = arith.divf %129, %130 : vector<8x1xf32>
    %132 = vector.broadcast %124 : vector<8x1xf32> to vector<8x32xf32>
    %133 = arith.subf %118, %132 : vector<8x32xf32>
    %cst_52 = arith.constant 9.99999974E-6 : f32
    %134 = vector.broadcast %cst_52 : f32 to vector<8x1xf32>
    %135 = arith.addf %131, %134 : vector<8x1xf32>
    %136 = math.rsqrt %135 : vector<8x1xf32>
    %137 = vector.broadcast %136 : vector<8x1xf32> to vector<8x32xf32>
    %138 = arith.mulf %133, %137 : vector<8x32xf32>
    %139 = vector.broadcast %119 : vector<1x32xf32> to vector<8x32xf32>
    %140 = arith.mulf %138, %139 : vector<8x32xf32>
    %141 = vector.broadcast %120 : vector<1x32xf32> to vector<8x32xf32>
    %142 = arith.addf %140, %141 : vector<8x32xf32>
    %c0_53 = arith.constant 0 : index
    %c0_54 = arith.constant 0 : index
    %c0_55 = arith.constant 0 : index
    %143 = vector.load %arg11[%c0_53, %c0_54, %c0_55] : memref<1x32x4xf32, #tpu.memory_space<vmem>>, vector<1x32x4xf32>
    %144 = vector.shape_cast %143 : vector<1x32x4xf32> to vector<32x4xf32>
    %cst_56 = arith.constant dense<0.000000e+00> : vector<8x4xf32>
    %145 = tpu.matmul %142, %144, %cst_56 {dimension_numbers = #tpu.dot_dimension_numbers<[1], [0], [0], [1], [0, 0, 1, 1], [], []>} : vector<8x32xf32>, vector<32x4xf32>, vector<8x4xf32> -> vector<8x4xf32>
    %c0_57 = arith.constant 0 : index
    %c0_58 = arith.constant 0 : index
    %c0_59 = arith.constant 0 : index
    %146 = vector.load %arg12[%c0_57, %c0_58, %c0_59] : memref<1x1x4xf32, #tpu.memory_space<vmem>>, vector<1x1x4xf32>
    %147 = vector.shape_cast %146 : vector<1x1x4xf32> to vector<1x4xf32>
    %148 = vector.broadcast %147 : vector<1x4xf32> to vector<8x4xf32>
    %149 = arith.addf %145, %148 : vector<8x4xf32>
    %150 = tpu.iota {dimensions = array<i32: 1>} : vector<8x4xi32>
    %cst_60 = arith.constant dense<0xFF800000> : vector<8xf32>
    %151 = vector.multi_reduction <maximumf>, %149, %cst_60 [1] : vector<8x4xf32> to vector<8xf32>
    %152 = vector.shape_cast %151 : vector<8xf32> to vector<8x1xf32>
    %153 = vector.broadcast %152 : vector<8x1xf32> to vector<8x4xf32>
    %154 = arith.cmpf oeq, %149, %153 : vector<8x4xf32>
    %c4_i32 = arith.constant 4 : i32
    %155 = vector.broadcast %c4_i32 : i32 to vector<8x4xi32>
    %156 = arith.select %154, %150, %155 : vector<8x4xi1>, vector<8x4xi32>
    %cst_61 = arith.constant dense<2147483647> : vector<8xi32>
    %157 = vector.multi_reduction <minsi>, %156, %cst_61 [1] : vector<8x4xi32> to vector<8xi32>
    %158 = vector.shape_cast %157 : vector<8xi32> to vector<8x1xi32>
    %159 = vector.broadcast %158 : vector<8x1xi32> to vector<8x4xi32>
    %160 = arith.cmpi eq, %150, %159 : vector<8x4xi32>
    %cst_62 = arith.constant 0xFF800000 : f32
    %161 = vector.broadcast %cst_62 : f32 to vector<8x4xf32>
    %162 = arith.select %160, %161, %149 : vector<8x4xi1>, vector<8x4xf32>
    %cst_63 = arith.constant dense<0xFF800000> : vector<8xf32>
    %163 = vector.multi_reduction <maximumf>, %162, %cst_63 [1] : vector<8x4xf32> to vector<8xf32>
    %164 = vector.shape_cast %163 : vector<8xf32> to vector<8x1xf32>
    %165 = vector.broadcast %164 : vector<8x1xf32> to vector<8x4xf32>
    %166 = arith.cmpf oeq, %162, %165 : vector<8x4xf32>
    %c4_i32_64 = arith.constant 4 : i32
    %167 = vector.broadcast %c4_i32_64 : i32 to vector<8x4xi32>
    %168 = arith.select %166, %150, %167 : vector<8x4xi1>, vector<8x4xi32>
    %cst_65 = arith.constant dense<2147483647> : vector<8xi32>
    %169 = vector.multi_reduction <minsi>, %168, %cst_65 [1] : vector<8x4xi32> to vector<8xi32>
    %170 = vector.shape_cast %169 : vector<8xi32> to vector<8x1xi32>
    %171 = vector.broadcast %170 : vector<8x1xi32> to vector<8x4xi32>
    %172 = arith.cmpi eq, %150, %171 : vector<8x4xi32>
    %173 = arith.subf %152, %152 : vector<8x1xf32>
    %174 = math.exp %173 : vector<8x1xf32>
    %175 = arith.subf %164, %152 : vector<8x1xf32>
    %176 = math.exp %175 : vector<8x1xf32>
    %177 = arith.addf %174, %176 : vector<8x1xf32>
    %cst_66 = arith.constant 0.000000e+00 : f32
    %178 = vector.broadcast %cst_66 : f32 to vector<8x4xf32>
    %179 = arith.extui %160 : vector<8x4xi1> to vector<8x4xi32>
    %180 = arith.sitofp %179 : vector<8x4xi32> to vector<8x4xf32>
    %181 = arith.divf %174, %177 : vector<8x1xf32>
    %182 = vector.broadcast %181 : vector<8x1xf32> to vector<8x4xf32>
    %183 = arith.mulf %180, %182 : vector<8x4xf32>
    %184 = arith.addf %178, %183 : vector<8x4xf32>
    %185 = arith.extui %172 : vector<8x4xi1> to vector<8x4xi32>
    %186 = arith.sitofp %185 : vector<8x4xi32> to vector<8x4xf32>
    %187 = arith.divf %176, %177 : vector<8x1xf32>
    %188 = vector.broadcast %187 : vector<8x1xf32> to vector<8x4xf32>
    %189 = arith.mulf %186, %188 : vector<8x4xf32>
    %190 = arith.addf %184, %189 : vector<8x4xf32>
    %191 = arith.truncf %142 : vector<8x32xf32> to vector<8x32xbf16>
    %c0_67 = arith.constant 0 : index
    %c0_68 = arith.constant 0 : index
    %c0_69 = arith.constant 0 : index
    %192 = vector.load %arg13[%c0_67, %c0_68, %c0_69] : memref<1x32x128xbf16, #tpu.memory_space<vmem>>, vector<1x32x128xbf16>
    %193 = vector.shape_cast %192 : vector<1x32x128xbf16> to vector<32x128xbf16>
    %cst_70 = arith.constant dense<0.000000e+00> : vector<8x128xf32>
    %194 = tpu.matmul %191, %193, %cst_70 {dimension_numbers = #tpu.dot_dimension_numbers<[1], [0], [0], [1], [0, 0, 1, 1], [], []>} : vector<8x32xbf16>, vector<32x128xbf16>, vector<8x128xf32> -> vector<8x128xf32>
    %c0_71 = arith.constant 0 : index
    %c0_72 = arith.constant 0 : index
    %c0_73 = arith.constant 0 : index
    %195 = vector.load %arg14[%c0_71, %c0_72, %c0_73] : memref<1x1x128xf32, #tpu.memory_space<vmem>>, vector<1x1x128xf32>
    %196 = vector.shape_cast %195 : vector<1x1x128xf32> to vector<1x128xf32>
    %197 = vector.broadcast %196 : vector<1x128xf32> to vector<8x128xf32>
    %198 = arith.addf %194, %197 : vector<8x128xf32>
    %cst_74 = arith.constant 5.000000e-01 : f32
    %199 = vector.broadcast %cst_74 : f32 to vector<8x128xf32>
    %200 = arith.mulf %199, %198 : vector<8x128xf32>
    %cst_75 = arith.constant 0.707106769 : f32
    %201 = vector.broadcast %cst_75 : f32 to vector<8x128xf32>
    %202 = arith.mulf %198, %201 : vector<8x128xf32>
    %203 = math.absf %202 : vector<8x128xf32>
    %cst_76 = arith.constant 0.327591091 : f32
    %204 = vector.broadcast %cst_76 : f32 to vector<8x128xf32>
    %205 = arith.mulf %204, %203 : vector<8x128xf32>
    %cst_77 = arith.constant 1.000000e+00 : f32
    %206 = vector.broadcast %cst_77 : f32 to vector<8x128xf32>
    %207 = arith.addf %206, %205 : vector<8x128xf32>
    %cst_78 = arith.constant 1.000000e+00 : f32
    %208 = vector.broadcast %cst_78 : f32 to vector<8x128xf32>
    %209 = arith.divf %208, %207 : vector<8x128xf32>
    %cst_79 = arith.constant 1.06140542 : f32
    %210 = vector.broadcast %cst_79 : f32 to vector<8x128xf32>
    %211 = arith.mulf %210, %209 : vector<8x128xf32>
    %cst_80 = arith.constant -1.45315206 : f32
    %212 = vector.broadcast %cst_80 : f32 to vector<8x128xf32>
    %213 = arith.addf %211, %212 : vector<8x128xf32>
    %214 = arith.mulf %213, %209 : vector<8x128xf32>
    %cst_81 = arith.constant 1.42141378 : f32
    %215 = vector.broadcast %cst_81 : f32 to vector<8x128xf32>
    %216 = arith.addf %214, %215 : vector<8x128xf32>
    %217 = arith.mulf %216, %209 : vector<8x128xf32>
    %cst_82 = arith.constant -0.284496725 : f32
    %218 = vector.broadcast %cst_82 : f32 to vector<8x128xf32>
    %219 = arith.addf %217, %218 : vector<8x128xf32>
    %220 = arith.mulf %219, %209 : vector<8x128xf32>
    %cst_83 = arith.constant 0.254829586 : f32
    %221 = vector.broadcast %cst_83 : f32 to vector<8x128xf32>
    %222 = arith.addf %220, %221 : vector<8x128xf32>
    %223 = arith.mulf %222, %209 : vector<8x128xf32>
    %cst_84 = arith.constant 0.000000e+00 : f32
    %224 = vector.broadcast %cst_84 : f32 to vector<8x128xf32>
    %225 = arith.subf %224, %203 : vector<8x128xf32>
    %226 = arith.mulf %225, %203 : vector<8x128xf32>
    %227 = math.exp %226 : vector<8x128xf32>
    %228 = arith.mulf %223, %227 : vector<8x128xf32>
    %cst_85 = arith.constant 1.000000e+00 : f32
    %229 = vector.broadcast %cst_85 : f32 to vector<8x128xf32>
    %230 = arith.subf %229, %228 : vector<8x128xf32>
    %cst_86 = arith.constant 0.000000e+00 : f32
    %231 = vector.broadcast %cst_86 : f32 to vector<8x128xf32>
    %232 = arith.cmpf oge, %202, %231 : vector<8x128xf32>
    %cst_87 = arith.constant 0.000000e+00 : f32
    %233 = vector.broadcast %cst_87 : f32 to vector<8x128xf32>
    %234 = arith.subf %233, %230 : vector<8x128xf32>
    %235 = arith.select %232, %230, %234 : vector<8x128xi1>, vector<8x128xf32>
    %cst_88 = arith.constant 1.000000e+00 : f32
    %236 = vector.broadcast %cst_88 : f32 to vector<8x128xf32>
    %237 = arith.addf %236, %235 : vector<8x128xf32>
    %238 = arith.mulf %200, %237 : vector<8x128xf32>
    %c0_89 = arith.constant 0 : index
    %c0_90 = arith.constant 0 : index
    %239 = vector.load %arg17[%c0_89, %c0_90] : memref<4x128xf32, #tpu.memory_space<vmem>>, vector<4x128xf32>
    %cst_91 = arith.constant dense<0.000000e+00> : vector<8x128xf32>
    %240 = tpu.matmul %190, %239, %cst_91 {dimension_numbers = #tpu.dot_dimension_numbers<[1], [0], [0], [1], [0, 0, 1, 1], [], []>} : vector<8x4xf32>, vector<4x128xf32>, vector<8x128xf32> -> vector<8x128xf32>
    %241 = arith.mulf %238, %240 : vector<8x128xf32>
    %242 = arith.truncf %241 : vector<8x128xf32> to vector<8x128xbf16>
    %c0_92 = arith.constant 0 : index
    %c0_93 = arith.constant 0 : index
    %c0_94 = arith.constant 0 : index
    %243 = vector.load %arg15[%c0_92, %c0_93, %c0_94] : memref<1x128x32xbf16, #tpu.memory_space<vmem>>, vector<1x128x32xbf16>
    %244 = vector.shape_cast %243 : vector<1x128x32xbf16> to vector<128x32xbf16>
    %cst_95 = arith.constant dense<0.000000e+00> : vector<8x32xf32>
    %245 = tpu.matmul %242, %244, %cst_95 {dimension_numbers = #tpu.dot_dimension_numbers<[1], [0], [0], [1], [0, 0, 1, 1], [], []>} : vector<8x128xbf16>, vector<128x32xbf16>, vector<8x32xf32> -> vector<8x32xf32>
    %c0_96 = arith.constant 0 : index
    %c0_97 = arith.constant 0 : index
    %c0_98 = arith.constant 0 : index
    %246 = vector.load %arg16[%c0_96, %c0_97, %c0_98] : memref<1x4x32xf32, #tpu.memory_space<vmem>>, vector<1x4x32xf32>
    %247 = vector.shape_cast %246 : vector<1x4x32xf32> to vector<4x32xf32>
    %cst_99 = arith.constant dense<0.000000e+00> : vector<8x32xf32>
    %248 = tpu.matmul %190, %247, %cst_99 {dimension_numbers = #tpu.dot_dimension_numbers<[1], [0], [0], [1], [0, 0, 1, 1], [], []>} : vector<8x4xf32>, vector<4x32xf32>, vector<8x32xf32> -> vector<8x32xf32>
    %249 = arith.addf %245, %248 : vector<8x32xf32>
    %250 = arith.addf %118, %249 : vector<8x32xf32>
    %c0_100 = arith.constant 0 : index
    %c0_101 = arith.constant 0 : index
    %251 = vector.load %arg21[%c0_100, %c0_101] : memref<8x32xf32, #tpu.memory_space<vmem>>, vector<8x32xf32>
    tpu.vector_store %arg21[%c0_100, %c0_101], %250 {strides = array<i32>} : memref<8x32xf32, #tpu.memory_space<vmem>>, vector<8x32xf32>,
    %c1_i32 = arith.constant 1 : i32
    %252 = arith.cmpi eq, %arg1, %c1_i32 : i32
    %253 = arith.extui %252 : i1 to i32
    %c0_i32_102 = arith.constant 0 : i32
    %254 = arith.cmpi ne, %253, %c0_i32_102 : i32
    scf.if %254 {
      %cst_103 = arith.constant dense<0.000000e+00> : vector<32xf32>
      %255 = vector.multi_reduction <add>, %250, %cst_103 [0] : vector<8x32xf32> to vector<32xf32>
      %256 = vector.shape_cast %255 : vector<32xf32> to vector<1x32xf32>
      %cst_104 = arith.constant 8.000000e+00 : f32
      %257 = vector.broadcast %cst_104 : f32 to vector<1x32xf32>
      %258 = arith.divf %256, %257 : vector<1x32xf32>
      %259 = arith.truncf %258 : vector<1x32xf32> to vector<1x32xbf16>
      %c0_105 = arith.constant 0 : index
      %c0_106 = arith.constant 0 : index
      %260 = vector.load %arg18[%c0_105, %c0_106] : memref<32x10xbf16, #tpu.memory_space<vmem>>, vector<32x10xbf16>
      %cst_107 = arith.constant dense<0.000000e+00> : vector<1x10xf32>
      %261 = tpu.matmul %259, %260, %cst_107 {dimension_numbers = #tpu.dot_dimension_numbers<[1], [0], [0], [1], [0, 0, 1, 1], [], []>} : vector<1x32xbf16>, vector<32x10xbf16>, vector<1x10xf32> -> vector<1x10xf32>
      %c0_108 = arith.constant 0 : index
      %c0_109 = arith.constant 0 : index
      %262 = vector.load %arg19[%c0_108, %c0_109] : memref<1x10xf32, #tpu.memory_space<vmem>>, vector<1x10xf32>
      %263 = arith.addf %261, %262 : vector<1x10xf32>
      %c0_110 = arith.constant 0 : index
      %c0_111 = arith.constant 0 : index
      %c0_112 = arith.constant 0 : index
      %264 = vector.load %arg20[%c0_110, %c0_111, %c0_112] : memref<1x1x10xf32, #tpu.memory_space<vmem>>, vector<1x1x10xf32>
      %265 = vector.shape_cast %264 : vector<1x1x10xf32> to vector<1x10xf32>
      %266 = vector.shape_cast %263 : vector<1x10xf32> to vector<1x1x10xf32>
      tpu.vector_store %arg20[%c0_110, %c0_111, %c0_112], %266 {strides = array<i32>} : memref<1x1x10xf32, #tpu.memory_space<vmem>>, vector<1x1x10xf32>,
    } else {
    }
    return
  }
  func.func @transform_0(%arg0: i32, %arg1: i32) -> (i32, i32, i32) {
    %c0_i32 = arith.constant 0 : i32
    %c0_i32_0 = arith.constant 0 : i32
    %c0_i32_1 = arith.constant 0 : i32
    return %arg0, %c0_i32, %c0_i32_0 : i32, i32, i32
  }
  func.func @transform_1(%arg0: i32, %arg1: i32) -> (i32, i32) {
    %c0_i32 = arith.constant 0 : i32
    %c0_i32_0 = arith.constant 0 : i32
    %c0_i32_1 = arith.constant 0 : i32
    return %c0_i32, %c0_i32_0 : i32, i32
  }
  func.func @transform_2(%arg0: i32, %arg1: i32) -> (i32, i32) {
    %c0_i32 = arith.constant 0 : i32
    %c0_i32_0 = arith.constant 0 : i32
    %c0_i32_1 = arith.constant 0 : i32
    return %c0_i32, %c0_i32_0 : i32, i32
  }
  func.func @transform_3(%arg0: i32, %arg1: i32) -> (i32, i32) {
    %c0_i32 = arith.constant 0 : i32
    %c0_i32_0 = arith.constant 0 : i32
    %c0_i32_1 = arith.constant 0 : i32
    return %c0_i32, %c0_i32_0 : i32, i32
  }
  func.func @transform_4(%arg0: i32, %arg1: i32) -> (i32, i32) {
    %c0_i32 = arith.constant 0 : i32
    %c0_i32_0 = arith.constant 0 : i32
    %c0_i32_1 = arith.constant 0 : i32
    return %c0_i32, %c0_i32_0 : i32, i32
  }
  func.func @transform_5(%arg0: i32, %arg1: i32) -> (i32, i32, i32) {
    %c0_i32 = arith.constant 0 : i32
    %c0_i32_0 = arith.constant 0 : i32
    %c0_i32_1 = arith.constant 0 : i32
    return %arg1, %c0_i32, %c0_i32_0 : i32, i32, i32
  }
  func.func @transform_6(%arg0: i32, %arg1: i32) -> (i32, i32, i32) {
    %c0_i32 = arith.constant 0 : i32
    %c0_i32_0 = arith.constant 0 : i32
    %c0_i32_1 = arith.constant 0 : i32
    return %arg1, %c0_i32, %c0_i32_0 : i32, i32, i32
  }
  func.func @transform_7(%arg0: i32, %arg1: i32) -> (i32, i32, i32) {
    %c0_i32 = arith.constant 0 : i32
    %c0_i32_0 = arith.constant 0 : i32
    %c0_i32_1 = arith.constant 0 : i32
    return %arg1, %c0_i32, %c0_i32_0 : i32, i32, i32
  }
  func.func @transform_8(%arg0: i32, %arg1: i32) -> (i32, i32, i32) {
    %c0_i32 = arith.constant 0 : i32
    %c0_i32_0 = arith.constant 0 : i32
    %c0_i32_1 = arith.constant 0 : i32
    return %arg1, %c0_i32, %c0_i32_0 : i32, i32, i32
  }
  func.func @transform_9(%arg0: i32, %arg1: i32) -> (i32, i32, i32) {
    %c0_i32 = arith.constant 0 : i32
    %c0_i32_0 = arith.constant 0 : i32
    %c0_i32_1 = arith.constant 0 : i32
    return %arg1, %c0_i32, %c0_i32_0 : i32, i32, i32
  }
  func.func @transform_10(%arg0: i32, %arg1: i32) -> (i32, i32, i32) {
    %c0_i32 = arith.constant 0 : i32
    %c0_i32_0 = arith.constant 0 : i32
    %c0_i32_1 = arith.constant 0 : i32
    return %arg1, %c0_i32, %c0_i32_0 : i32, i32, i32
  }
  func.func @transform_11(%arg0: i32, %arg1: i32) -> (i32, i32, i32) {
    %c0_i32 = arith.constant 0 : i32
    %c0_i32_0 = arith.constant 0 : i32
    %c0_i32_1 = arith.constant 0 : i32
    return %arg1, %c0_i32, %c0_i32_0 : i32, i32, i32
  }
  func.func @transform_12(%arg0: i32, %arg1: i32) -> (i32, i32, i32) {
    %c0_i32 = arith.constant 0 : i32
    %c0_i32_0 = arith.constant 0 : i32
    %c0_i32_1 = arith.constant 0 : i32
    return %arg1, %c0_i32, %c0_i32_0 : i32, i32, i32
  }
  func.func @transform_13(%arg0: i32, %arg1: i32) -> (i32, i32, i32) {
    %c0_i32 = arith.constant 0 : i32
    %c0_i32_0 = arith.constant 0 : i32
    %c0_i32_1 = arith.constant 0 : i32
    return %arg1, %c0_i32, %c0_i32_0 : i32, i32, i32
  }
  func.func @transform_14(%arg0: i32, %arg1: i32) -> (i32, i32, i32) {
    %c0_i32 = arith.constant 0 : i32
    %c0_i32_0 = arith.constant 0 : i32
    %c0_i32_1 = arith.constant 0 : i32
    return %arg1, %c0_i32, %c0_i32_0 : i32, i32, i32
  }
  func.func @transform_15(%arg0: i32, %arg1: i32) -> (i32, i32) {
    %c0_i32 = arith.constant 0 : i32
    %c0_i32_0 = arith.constant 0 : i32
    %c0_i32_1 = arith.constant 0 : i32
    return %c0_i32, %c0_i32_0 : i32, i32
  }
  func.func @transform_16(%arg0: i32, %arg1: i32) -> (i32, i32) {
    %c0_i32 = arith.constant 0 : i32
    %c0_i32_0 = arith.constant 0 : i32
    %c0_i32_1 = arith.constant 0 : i32
    return %c0_i32, %c0_i32_0 : i32, i32
  }
  func.func @transform_17(%arg0: i32, %arg1: i32) -> (i32, i32) {
    %c0_i32 = arith.constant 0 : i32
    %c0_i32_0 = arith.constant 0 : i32
    %c0_i32_1 = arith.constant 0 : i32
    return %c0_i32, %c0_i32_0 : i32, i32
  }
  func.func @transform_18(%arg0: i32, %arg1: i32) -> (i32, i32, i32) {
    %c0_i32 = arith.constant 0 : i32
    %c0_i32_0 = arith.constant 0 : i32
    %c0_i32_1 = arith.constant 0 : i32
    return %arg0, %c0_i32, %c0_i32_0 : i32, i32, i32
  }
}

</mosaic_0001>

<llo_original>
// kernel: moe_forward.1
$region0: #{moe_forward.1}
  #allocation0 [shape = 'u32[]', space=smem, size = 0x4, offset = 0x4, fixed_abs, tag = 'smem constant byte address 0x4 - core index']
  #allocation1 [shape = 'u32[144,128]{1,0:T(1,128)}', space=vmem, size = 0x12000, scoped, tag = 'internal scratch']
  #allocation2 [shape = 'f32[8,32]{1,0:T(8,128)}', space=vmem, size = 0x1000, scoped, tag = 'scratch operand']
  %s0 = inlined_call_operand.vmem [shape: f32[2,8,32], index: 0, kind: input, shape index: {}]
  %s1 = inlined_call_operand.vmem [shape: f32[1,32], index: 1, kind: input, shape index: {}]
  %s2 = inlined_call_operand.vmem [shape: f32[1,32], index: 2, kind: input, shape index: {}]
  %s3 = inlined_call_operand.vmem [shape: f32[1,32], index: 3, kind: input, shape index: {}]
  %s4 = inlined_call_operand.vmem [shape: f32[1,32], index: 4, kind: input, shape index: {}]
  %s5 = inlined_call_operand.vmem [shape: bf16[2,32,96], index: 5, kind: input, shape index: {}]
  %s6 = inlined_call_operand.vmem [shape: f32[2,1,96], index: 6, kind: input, shape index: {}]
  %s7 = inlined_call_operand.vmem [shape: bf16[2,32,32], index: 7, kind: input, shape index: {}]
  %s8 = inlined_call_operand.vmem [shape: f32[2,1,32], index: 8, kind: input, shape index: {}]
  %s9 = inlined_call_operand.vmem [shape: f32[2,32,4], index: 9, kind: input, shape index: {}]
  %s10 = inlined_call_operand.vmem [shape: f32[2,1,4], index: 10, kind: input, shape index: {}]
  %s11 = inlined_call_operand.vmem [shape: bf16[2,32,128], index: 11, kind: input, shape index: {}]
  %s12 = inlined_call_operand.vmem [shape: f32[2,1,128], index: 12, kind: input, shape index: {}]
  %s13 = inlined_call_operand.vmem [shape: bf16[2,128,32], index: 13, kind: input, shape index: {}]
  %s14 = inlined_call_operand.vmem [shape: f32[2,4,32], index: 14, kind: input, shape index: {}]
  %s15 = inlined_call_operand.vmem [shape: f32[4,128], index: 15, kind: input, shape index: {}]
  %s16 = inlined_call_operand.vmem [shape: bf16[32,10], index: 16, kind: input, shape index: {}]
  %s17 = inlined_call_operand.vmem [shape: f32[1,10], index: 17, kind: input, shape index: {}]
  %s18 = inlined_call_operand.hbm [shape: f32[2,1,10], index: 18, kind: output, shape index: {}]
  %s19 = sld [smem:[#allocation0]]
  $region113: #{moe_forward.1} parent=0
    _
  %s21 = ssub.s32 1, %s19
  %s22 = scalar_select 0, %s21, %s19
  $region1: #{moe_forward.1} parent=0
    #allocation3 [shape = 'u8[1024]{0}', space=vmem, size = 0x400, scoped, tag = 'output window, operand 0']
    #allocation4 [shape = 's32[2]{0}', space=sflag, size = 0x8, scoped, tag = 'scoped memory for moe_forward.1']
    %23 = vsyncpa [#allocation4], 0
    %s24 = scalar_lea.sflag [#allocation4], 1
    %25 = vsyncpa %s24, 0
    loop: start=0, step=1, limit=6
    $region2: #{moe_forward.1} parent=1 // loop_pre_header
      _
    $region3: #{moe_forward.1} parent=1 // loop_header
      %s27 = sphi 0, %s31
      %p28 = scmp.ge.s32.totalorder %s27, 6
      %s34 = sphi 0, %s46
      %s35 = sphi 0, %s42
      %s36 = sphi 0, %s34
      %s37 = sphi 0, %s35
      %s38 = sphi 0, %s36
      %s39 = sphi 0, %s37
      %s49 = sphi 0, %s51
      %s52 = sphi 0, %s49
      %s53 = sphi 0, %s52
      %s69 = sphi 0, %s53
      %s73 = sphi 0, %s73
      %s75 = sphi 0, %s73
      %s76 = sphi 0, %s75
      %s90 = sphi 0, %s76
      %s94 = sphi 0, %s94
      %s96 = sphi 0, %s94
      %s97 = sphi 0, %s96
      %s111 = sphi 0, %s97
      %s115 = sphi 0, %s115
      %s117 = sphi 0, %s115
      %s118 = sphi 0, %s117
      %s132 = sphi 0, %s118
      %s136 = sphi 0, %s136
      %s138 = sphi 0, %s136
      %s139 = sphi 0, %s138
      %s153 = sphi 0, %s139
      %s159 = sphi 0, %s161
      %s162 = sphi 0, %s159
      %s163 = sphi 0, %s162
      %s179 = sphi 0, %s163
      %s185 = sphi 0, %s187
      %s188 = sphi 0, %s185
      %s189 = sphi 0, %s188
      %s205 = sphi 0, %s189
      %s211 = sphi 0, %s213
      %s214 = sphi 0, %s211
      %s215 = sphi 0, %s214
      %s231 = sphi 0, %s215
      %s237 = sphi 0, %s239
      %s240 = sphi 0, %s237
      %s241 = sphi 0, %s240
      %s257 = sphi 0, %s241
      %s263 = sphi 0, %s265
      %s266 = sphi 0, %s263
      %s267 = sphi 0, %s266
      %s283 = sphi 0, %s267
      %s289 = sphi 0, %s291
      %s292 = sphi 0, %s289
      %s293 = sphi 0, %s292
      %s309 = sphi 0, %s293
      %s315 = sphi 0, %s317
      %s318 = sphi 0, %s315
      %s319 = sphi 0, %s318
      %s335 = sphi 0, %s319
      %s341 = sphi 0, %s343
      %s344 = sphi 0, %s341
      %s345 = sphi 0, %s344
      %s361 = sphi 0, %s345
      %s367 = sphi 0, %s369
      %s370 = sphi 0, %s367
      %s371 = sphi 0, %s370
      %s387 = sphi 0, %s371
      %s393 = sphi 0, %s395
      %s396 = sphi 0, %s393
      %s397 = sphi 0, %s396
      %s413 = sphi 0, %s397
      %s417 = sphi 0, %s417
      %s419 = sphi 0, %s417
      %s420 = sphi 0, %s419
      %s434 = sphi 0, %s420
      %s438 = sphi 0, %s438
      %s440 = sphi 0, %s438
      %s441 = sphi 0, %s440
      %s455 = sphi 0, %s441
      %s459 = sphi 0, %s459
      %s461 = sphi 0, %s459
      %s462 = sphi 0, %s461
      %s476 = sphi 0, %s462
      %s482 = sphi 0, %s484
      %s485 = sphi 0, %s482
      %s486 = sphi 0, %s485
      %s502 = sphi 0, %s486
    $region4: #{moe_forward.1} parent=1 // loop_header_branch
      %30 = sbr.rel (%p28) target = $region8
    $region5: #{moe_forward.1} parent=1 // loop_body
      %s32 = ssub.s32 %s27, 1
      %s33 = ssub.s32 %s27, 2
      %s40 = sadd.s32 1, %s35
      %p41 = scmp.ge.s32.totalorder %s40, 2
      %s42 = scalar_select %p41, 0, %s40
      %s43 = sadd.s32 1, %s34
      %s44 = scalar_select %p41, %s43, %s34
      %p45 = scmp.ge.s32.totalorder %s44, 2
      %s46 = scalar_select %p45, 0, %s44
      %s47 = ssub.s32 %s34, %s46
      %p48 = scmp.eq.s32.totalorder %s47, 0
      %s50 = sadd.s32 %s49, 1
      %s51 = scalar_select %p48, %s49, %s50
      %p54 = pneg %p48
      %p55 = scmp.eq.s32.totalorder %s27, 3
      %p56 = por %p54, %p55
      %p57 = scmp.ne.s32.totalorder %s49, %s52
      %p58 = scmp.eq.s32.totalorder %s27, 0
      %p59 = por %p57, %p58
      %p60 = scmp.ne.s32.totalorder %s49, %s52
      %p61 = scmp.eq.s32.totalorder %s32, 3
      %p62 = por %p60, %p61
      %p63 = scmp.ne.s32.totalorder %s52, %s53
      %p64 = scmp.eq.s32.totalorder %s32, 0
      %p65 = por %p63, %p64
      %p66 = scmp.ne.s32.totalorder %s52, %s53
      %p67 = scmp.eq.s32.totalorder %s33, 3
      %p68 = por %p66, %p67
      %p70 = scmp.ne.s32.totalorder %s53, %s69
      %p71 = scmp.eq.s32.totalorder %s33, 0
      %p72 = por %p70, %p71
      %s74 = sadd.s32 %s73, 1
      %p77 = scmp.eq.s32.totalorder %s27, 3
      %p78 = scmp.ne.s32.totalorder %s73, %s75
      %p79 = scmp.eq.s32.totalorder %s27, 0
      %p80 = por %p78, %p79
      %p81 = scmp.ne.s32.totalorder %s73, %s75
      %p82 = scmp.eq.s32.totalorder %s32, 3
      %p83 = por %p81, %p82
      %p84 = scmp.ne.s32.totalorder %s75, %s76
      %p85 = scmp.eq.s32.totalorder %s32, 0
      %p86 = por %p84, %p85
      %p87 = scmp.ne.s32.totalorder %s75, %s76
      %p88 = scmp.eq.s32.totalorder %s33, 3
      %p89 = por %p87, %p88
      %p91 = scmp.ne.s32.totalorder %s76, %s90
      %p92 = scmp.eq.s32.totalorder %s33, 0
      %p93 = por %p91, %p92
      %s95 = sadd.s32 %s94, 1
      %p98 = scmp.eq.s32.totalorder %s27, 3
      %p99 = scmp.ne.s32.totalorder %s94, %s96
      %p100 = scmp.eq.s32.totalorder %s27, 0
      %p101 = por %p99, %p100
      %p102 = scmp.ne.s32.totalorder %s94, %s96
      %p103 = scmp.eq.s32.totalorder %s32, 3
      %p104 = por %p102, %p103
      %p105 = scmp.ne.s32.totalorder %s96, %s97
      %p106 = scmp.eq.s32.totalorder %s32, 0
      %p107 = por %p105, %p106
      %p108 = scmp.ne.s32.totalorder %s96, %s97
      %p109 = scmp.eq.s32.totalorder %s33, 3
      %p110 = por %p108, %p109
      %p112 = scmp.ne.s32.totalorder %s97, %s111
      %p113 = scmp.eq.s32.totalorder %s33, 0
      %p114 = por %p112, %p113
      %s116 = sadd.s32 %s115, 1
      %p119 = scmp.eq.s32.totalorder %s27, 3
      %p120 = scmp.ne.s32.totalorder %s115, %s117
      %p121 = scmp.eq.s32.totalorder %s27, 0
      %p122 = por %p120, %p121
      %p123 = scmp.ne.s32.totalorder %s115, %s117
      %p124 = scmp.eq.s32.totalorder %s32, 3
      %p125 = por %p123, %p124
      %p126 = scmp.ne.s32.totalorder %s117, %s118
      %p127 = scmp.eq.s32.totalorder %s32, 0
      %p128 = por %p126, %p127
      %p129 = scmp.ne.s32.totalorder %s117, %s118
      %p130 = scmp.eq.s32.totalorder %s33, 3
      %p131 = por %p129, %p130
      %p133 = scmp.ne.s32.totalorder %s118, %s132
      %p134 = scmp.eq.s32.totalorder %s33, 0
      %p135 = por %p133, %p134
      %s137 = sadd.s32 %s136, 1
      %p140 = scmp.eq.s32.totalorder %s27, 3
      %p141 = scmp.ne.s32.totalorder %s136, %s138
      %p142 = scmp.eq.s32.totalorder %s27, 0
      %p143 = por %p141, %p142
      %p144 = scmp.ne.s32.totalorder %s136, %s138
      %p145 = scmp.eq.s32.totalorder %s32, 3
      %p146 = por %p144, %p145
      %p147 = scmp.ne.s32.totalorder %s138, %s139
      %p148 = scmp.eq.s32.totalorder %s32, 0
      %p149 = por %p147, %p148
      %p150 = scmp.ne.s32.totalorder %s138, %s139
      %p151 = scmp.eq.s32.totalorder %s33, 3
      %p152 = por %p150, %p151
      %p154 = scmp.ne.s32.totalorder %s139, %s153
      %p155 = scmp.eq.s32.totalorder %s33, 0
      %p156 = por %p154, %p155
      %s157 = ssub.s32 %s35, %s42
      %p158 = scmp.eq.s32.totalorder %s157, 0
      %s160 = sadd.s32 %s159, 1
      %s161 = scalar_select %p158, %s159, %s160
      %p164 = pneg %p158
      %p165 = scmp.eq.s32.totalorder %s27, 3
      %p166 = por %p164, %p165
      %p167 = scmp.ne.s32.totalorder %s159, %s162
      %p168 = scmp.eq.s32.totalorder %s27, 0
      %p169 = por %p167, %p168
      %p170 = scmp.ne.s32.totalorder %s159, %s162
      %p171 = scmp.eq.s32.totalorder %s32, 3
      %p172 = por %p170, %p171
      %p173 = scmp.ne.s32.totalorder %s162, %s163
      %p174 = scmp.eq.s32.totalorder %s32, 0
      %p175 = por %p173, %p174
      %p176 = scmp.ne.s32.totalorder %s162, %s163
      %p177 = scmp.eq.s32.totalorder %s33, 3
      %p178 = por %p176, %p177
      %p180 = scmp.ne.s32.totalorder %s163, %s179
      %p181 = scmp.eq.s32.totalorder %s33, 0
      %p182 = por %p180, %p181
      %s183 = ssub.s32 %s35, %s42
      %p184 = scmp.eq.s32.totalorder %s183, 0
      %s186 = sadd.s32 %s185, 1
      %s187 = scalar_select %p184, %s185, %s186
      %p190 = pneg %p184
      %p191 = scmp.eq.s32.totalorder %s27, 3
      %p192 = por %p190, %p191
      %p193 = scmp.ne.s32.totalorder %s185, %s188
      %p194 = scmp.eq.s32.totalorder %s27, 0
      %p195 = por %p193, %p194
      %p196 = scmp.ne.s32.totalorder %s185, %s188
      %p197 = scmp.eq.s32.totalorder %s32, 3
      %p198 = por %p196, %p197
      %p199 = scmp.ne.s32.totalorder %s188, %s189
      %p200 = scmp.eq.s32.totalorder %s32, 0
      %p201 = por %p199, %p200
      %p202 = scmp.ne.s32.totalorder %s188, %s189
      %p203 = scmp.eq.s32.totalorder %s33, 3
      %p204 = por %p202, %p203
      %p206 = scmp.ne.s32.totalorder %s189, %s205
      %p207 = scmp.eq.s32.totalorder %s33, 0
      %p208 = por %p206, %p207
      %s209 = ssub.s32 %s35, %s42
      %p210 = scmp.eq.s32.totalorder %s209, 0
      %s212 = sadd.s32 %s211, 1
      %s213 = scalar_select %p210, %s211, %s212
      %p216 = pneg %p210
      %p217 = scmp.eq.s32.totalorder %s27, 3
      %p218 = por %p216, %p217
      %p219 = scmp.ne.s32.totalorder %s211, %s214
      %p220 = scmp.eq.s32.totalorder %s27, 0
      %p221 = por %p219, %p220
      %p222 = scmp.ne.s32.totalorder %s211, %s214
      %p223 = scmp.eq.s32.totalorder %s32, 3
      %p224 = por %p222, %p223
      %p225 = scmp.ne.s32.totalorder %s214, %s215
      %p226 = scmp.eq.s32.totalorder %s32, 0
      %p227 = por %p225, %p226
      %p228 = scmp.ne.s32.totalorder %s214, %s215
      %p229 = scmp.eq.s32.totalorder %s33, 3
      %p230 = por %p228, %p229
      %p232 = scmp.ne.s32.totalorder %s215, %s231
      %p233 = scmp.eq.s32.totalorder %s33, 0
      %p234 = por %p232, %p233
      %s235 = ssub.s32 %s35, %s42
      %p236 = scmp.eq.s32.totalorder %s235, 0
      %s238 = sadd.s32 %s237, 1
      %s239 = scalar_select %p236, %s237, %s238
      %p242 = pneg %p236
      %p243 = scmp.eq.s32.totalorder %s27, 3
      %p244 = por %p242, %p243
      %p245 = scmp.ne.s32.totalorder %s237, %s240
      %p246 = scmp.eq.s32.totalorder %s27, 0
      %p247 = por %p245, %p246
      %p248 = scmp.ne.s32.totalorder %s237, %s240
      %p249 = scmp.eq.s32.totalorder %s32, 3
      %p250 = por %p248, %p249
      %p251 = scmp.ne.s32.totalorder %s240, %s241
      %p252 = scmp.eq.s32.totalorder %s32, 0
      %p253 = por %p251, %p252
      %p254 = scmp.ne.s32.totalorder %s240, %s241
      %p255 = scmp.eq.s32.totalorder %s33, 3
      %p256 = por %p254, %p255
      %p258 = scmp.ne.s32.totalorder %s241, %s257
      %p259 = scmp.eq.s32.totalorder %s33, 0
      %p260 = por %p258, %p259
      %s261 = ssub.s32 %s35, %s42
      %p262 = scmp.eq.s32.totalorder %s261, 0
      %s264 = sadd.s32 %s263, 1
      %s265 = scalar_select %p262, %s263, %s264
      %p268 = pneg %p262
      %p269 = scmp.eq.s32.totalorder %s27, 3
      %p270 = por %p268, %p269
      %p271 = scmp.ne.s32.totalorder %s263, %s266
      %p272 = scmp.eq.s32.totalorder %s27, 0
      %p273 = por %p271, %p272
      %p274 = scmp.ne.s32.totalorder %s263, %s266
      %p275 = scmp.eq.s32.totalorder %s32, 3
      %p276 = por %p274, %p275
      %p277 = scmp.ne.s32.totalorder %s266, %s267
      %p278 = scmp.eq.s32.totalorder %s32, 0
      %p279 = por %p277, %p278
      %p280 = scmp.ne.s32.totalorder %s266, %s267
      %p281 = scmp.eq.s32.totalorder %s33, 3
      %p282 = por %p280, %p281
      %p284 = scmp.ne.s32.totalorder %s267, %s283
      %p285 = scmp.eq.s32.totalorder %s33, 0
      %p286 = por %p284, %p285
      %s287 = ssub.s32 %s35, %s42
      %p288 = scmp.eq.s32.totalorder %s287, 0
      %s290 = sadd.s32 %s289, 1
      %s291 = scalar_select %p288, %s289, %s290
      %p294 = pneg %p288
      %p295 = scmp.eq.s32.totalorder %s27, 3
      %p296 = por %p294, %p295
      %p297 = scmp.ne.s32.totalorder %s289, %s292
      %p298 = scmp.eq.s32.totalorder %s27, 0
      %p299 = por %p297, %p298
      %p300 = scmp.ne.s32.totalorder %s289, %s292
      %p301 = scmp.eq.s32.totalorder %s32, 3
      %p302 = por %p300, %p301
      %p303 = scmp.ne.s32.totalorder %s292, %s293
      %p304 = scmp.eq.s32.totalorder %s32, 0
      %p305 = por %p303, %p304
      %p306 = scmp.ne.s32.totalorder %s292, %s293
      %p307 = scmp.eq.s32.totalorder %s33, 3
      %p308 = por %p306, %p307
      %p310 = scmp.ne.s32.totalorder %s293, %s309
      %p311 = scmp.eq.s32.totalorder %s33, 0
      %p312 = por %p310, %p311
      %s313 = ssub.s32 %s35, %s42
      %p314 = scmp.eq.s32.totalorder %s313, 0
      %s316 = sadd.s32 %s315, 1
      %s317 = scalar_select %p314, %s315, %s316
      %p320 = pneg %p314
      %p321 = scmp.eq.s32.totalorder %s27, 3
      %p322 = por %p320, %p321
      %p323 = scmp.ne.s32.totalorder %s315, %s318
      %p324 = scmp.eq.s32.totalorder %s27, 0
      %p325 = por %p323, %p324
      %p326 = scmp.ne.s32.totalorder %s315, %s318
      %p327 = scmp.eq.s32.totalorder %s32, 3
      %p328 = por %p326, %p327
      %p329 = scmp.ne.s32.totalorder %s318, %s319
      %p330 = scmp.eq.s32.totalorder %s32, 0
      %p331 = por %p329, %p330
      %p332 = scmp.ne.s32.totalorder %s318, %s319
      %p333 = scmp.eq.s32.totalorder %s33, 3
      %p334 = por %p332, %p333
      %p336 = scmp.ne.s32.totalorder %s319, %s335
      %p337 = scmp.eq.s32.totalorder %s33, 0
      %p338 = por %p336, %p337
      %s339 = ssub.s32 %s35, %s42
      %p340 = scmp.eq.s32.totalorder %s339, 0
      %s342 = sadd.s32 %s341, 1
      %s343 = scalar_select %p340, %s341, %s342
      %p346 = pneg %p340
      %p347 = scmp.eq.s32.totalorder %s27, 3
      %p348 = por %p346, %p347
      %p349 = scmp.ne.s32.totalorder %s341, %s344
      %p350 = scmp.eq.s32.totalorder %s27, 0
      %p351 = por %p349, %p350
      %p352 = scmp.ne.s32.totalorder %s341, %s344
      %p353 = scmp.eq.s32.totalorder %s32, 3
      %p354 = por %p352, %p353
      %p355 = scmp.ne.s32.totalorder %s344, %s345
      %p356 = scmp.eq.s32.totalorder %s32, 0
      %p357 = por %p355, %p356
      %p358 = scmp.ne.s32.totalorder %s344, %s345
      %p359 = scmp.eq.s32.totalorder %s33, 3
      %p360 = por %p358, %p359
      %p362 = scmp.ne.s32.totalorder %s345, %s361
      %p363 = scmp.eq.s32.totalorder %s33, 0
      %p364 = por %p362, %p363
      %s365 = ssub.s32 %s35, %s42
      %p366 = scmp.eq.s32.totalorder %s365, 0
      %s368 = sadd.s32 %s367, 1
      %s369 = scalar_select %p366, %s367, %s368
      %p372 = pneg %p366
      %p373 = scmp.eq.s32.totalorder %s27, 3
      %p374 = por %p372, %p373
      %p375 = scmp.ne.s32.totalorder %s367, %s370
      %p376 = scmp.eq.s32.totalorder %s27, 0
      %p377 = por %p375, %p376
      %p378 = scmp.ne.s32.totalorder %s367, %s370
      %p379 = scmp.eq.s32.totalorder %s32, 3
      %p380 = por %p378, %p379
      %p381 = scmp.ne.s32.totalorder %s370, %s371
      %p382 = scmp.eq.s32.totalorder %s32, 0
      %p383 = por %p381, %p382
      %p384 = scmp.ne.s32.totalorder %s370, %s371
      %p385 = scmp.eq.s32.totalorder %s33, 3
      %p386 = por %p384, %p385
      %p388 = scmp.ne.s32.totalorder %s371, %s387
      %p389 = scmp.eq.s32.totalorder %s33, 0
      %p390 = por %p388, %p389
      %s391 = ssub.s32 %s35, %s42
      %p392 = scmp.eq.s32.totalorder %s391, 0
      %s394 = sadd.s32 %s393, 1
      %s395 = scalar_select %p392, %s393, %s394
      %p398 = pneg %p392
      %p399 = scmp.eq.s32.totalorder %s27, 3
      %p400 = por %p398, %p399
      %p401 = scmp.ne.s32.totalorder %s393, %s396
      %p402 = scmp.eq.s32.totalorder %s27, 0
      %p403 = por %p401, %p402
      %p404 = scmp.ne.s32.totalorder %s393, %s396
      %p405 = scmp.eq.s32.totalorder %s32, 3
      %p406 = por %p404, %p405
      %p407 = scmp.ne.s32.totalorder %s396, %s397
      %p408 = scmp.eq.s32.totalorder %s32, 0
      %p409 = por %p407, %p408
      %p410 = scmp.ne.s32.totalorder %s396, %s397
      %p411 = scmp.eq.s32.totalorder %s33, 3
      %p412 = por %p410, %p411
      %p414 = scmp.ne.s32.totalorder %s397, %s413
      %p415 = scmp.eq.s32.totalorder %s33, 0
      %p416 = por %p414, %p415
      %s418 = sadd.s32 %s417, 1
      %p421 = scmp.eq.s32.totalorder %s27, 3
      %p422 = scmp.ne.s32.totalorder %s417, %s419
      %p423 = scmp.eq.s32.totalorder %s27, 0
      %p424 = por %p422, %p423
      %p425 = scmp.ne.s32.totalorder %s417, %s419
      %p426 = scmp.eq.s32.totalorder %s32, 3
      %p427 = por %p425, %p426
      %p428 = scmp.ne.s32.totalorder %s419, %s420
      %p429 = scmp.eq.s32.totalorder %s32, 0
      %p430 = por %p428, %p429
      %p431 = scmp.ne.s32.totalorder %s419, %s420
      %p432 = scmp.eq.s32.totalorder %s33, 3
      %p433 = por %p431, %p432
      %p435 = scmp.ne.s32.totalorder %s420, %s434
      %p436 = scmp.eq.s32.totalorder %s33, 0
      %p437 = por %p435, %p436
      %s439 = sadd.s32 %s438, 1
      %p442 = scmp.eq.s32.totalorder %s27, 3
      %p443 = scmp.ne.s32.totalorder %s438, %s440
      %p444 = scmp.eq.s32.totalorder %s27, 0
      %p445 = por %p443, %p444
      %p446 = scmp.ne.s32.totalorder %s438, %s440
      %p447 = scmp.eq.s32.totalorder %s32, 3
      %p448 = por %p446, %p447
      %p449 = scmp.ne.s32.totalorder %s440, %s441
      %p450 = scmp.eq.s32.totalorder %s32, 0
      %p451 = por %p449, %p450
      %p452 = scmp.ne.s32.totalorder %s440, %s441
      %p453 = scmp.eq.s32.totalorder %s33, 3
      %p454 = por %p452, %p453
      %p456 = scmp.ne.s32.totalorder %s441, %s455
      %p457 = scmp.eq.s32.totalorder %s33, 0
      %p458 = por %p456, %p457
      %s460 = sadd.s32 %s459, 1
      %p463 = scmp.eq.s32.totalorder %s27, 3
      %p464 = scmp.ne.s32.totalorder %s459, %s461
      %p465 = scmp.eq.s32.totalorder %s27, 0
      %p466 = por %p464, %p465
      %p467 = scmp.ne.s32.totalorder %s459, %s461
      %p468 = scmp.eq.s32.totalorder %s32, 3
      %p469 = por %p467, %p468
      %p470 = scmp.ne.s32.totalorder %s461, %s462
      %p471 = scmp.eq.s32.totalorder %s32, 0
      %p472 = por %p470, %p471
      %p473 = scmp.ne.s32.totalorder %s461, %s462
      %p474 = scmp.eq.s32.totalorder %s33, 3
      %p475 = por %p473, %p474
      %p477 = scmp.ne.s32.totalorder %s462, %s476
      %p478 = scmp.eq.s32.totalorder %s33, 0
      %p479 = por %p477, %p478
      %s480 = ssub.s32 %s34, %s46
      %p481 = scmp.eq.s32.totalorder %s480, 0
      %s483 = sadd.s32 %s482, 1
      %s484 = scalar_select %p481, %s482, %s483
      %p487 = pneg %p481
      %p488 = scmp.eq.s32.totalorder %s27, 3
      %p489 = por %p487, %p488
      %p490 = scmp.ne.s32.totalorder %s482, %s485
      %p491 = scmp.eq.s32.totalorder %s27, 0
      %p492 = por %p490, %p491
      %p493 = scmp.ne.s32.totalorder %s482, %s485
      %p494 = scmp.eq.s32.totalorder %s32, 3
      %p495 = por %p493, %p494
      %p496 = scmp.ne.s32.totalorder %s485, %s486
      %p497 = scmp.eq.s32.totalorder %s32, 0
      %p498 = por %p496, %p497
      %p499 = scmp.ne.s32.totalorder %s485, %s486
      %p500 = scmp.eq.s32.totalorder %s33, 3
      %p501 = por %p499, %p500
      %p503 = scmp.ne.s32.totalorder %s486, %s502
      %p504 = scmp.eq.s32.totalorder %s33, 0
      %p505 = por %p503, %p504
      %p506 = scmp.le.s32.totalorder 1, %s27
      %p507 = scmp.lt.s32.totalorder %s27, 5
      %p508 = pnand %p506, %p507
      %p509 = pneg %p508
      // Predicated region
      $region9: #{moe_forward.1} parent=5 // pred_check
        _
      $region10: #{moe_forward.1} parent=5 // pred_check_branch
        %511 = sbr.rel (%p508) target = $region12
      $region11: #{moe_forward.1} parent=5 // pred_region
        %s512 = ssub.s32 %s27, 1
        // Predicated region
        $region13: #{moe_forward.1} parent=11 // pred_check
          %p513 = pneg %p86
        $region14: #{moe_forward.1} parent=11 // pred_check_branch
          %515 = sbr.rel (%p513) target = $region16
        $region15: #{moe_forward.1} parent=11 // pred_region
          _
        $region16: #{moe_forward.1} parent=11 // pred_fallthru
          _
        // Predicated region
        $region17: #{moe_forward.1} parent=11 // pred_check
          %p516 = pneg %p107
        $region18: #{moe_forward.1} parent=11 // pred_check_branch
          %518 = sbr.rel (%p516) target = $region20
        $region19: #{moe_forward.1} parent=11 // pred_region
          _
        $region20: #{moe_forward.1} parent=11 // pred_fallthru
          _
        // Predicated region
        $region21: #{moe_forward.1} parent=11 // pred_check
          %p519 = pneg %p128
        $region22: #{moe_forward.1} parent=11 // pred_check_branch
          %521 = sbr.rel (%p519) target = $region24
        $region23: #{moe_forward.1} parent=11 // pred_region
          _
        $region24: #{moe_forward.1} parent=11 // pred_fallthru
          _
        // Predicated region
        $region25: #{moe_forward.1} parent=11 // pred_check
          %p522 = pneg %p149
        $region26: #{moe_forward.1} parent=11 // pred_check_branch
          %524 = sbr.rel (%p522) target = $region28
        $region27: #{moe_forward.1} parent=11 // pred_region
          _
        $region28: #{moe_forward.1} parent=11 // pred_fallthru
          _
        // Predicated region
        $region29: #{moe_forward.1} parent=11 // pred_check
          %p525 = pneg %p430
        $region30: #{moe_forward.1} parent=11 // pred_check_branch
          %527 = sbr.rel (%p525) target = $region32
        $region31: #{moe_forward.1} parent=11 // pred_region
          _
        $region32: #{moe_forward.1} parent=11 // pred_fallthru
          _
        // Predicated region
        $region33: #{moe_forward.1} parent=11 // pred_check
          %p528 = pneg %p451
        $region34: #{moe_forward.1} parent=11 // pred_check_branch
          %530 = sbr.rel (%p528) target = $region36
        $region35: #{moe_forward.1} parent=11 // pred_region
          _
        $region36: #{moe_forward.1} parent=11 // pred_fallthru
          _
        // Predicated region
        $region37: #{moe_forward.1} parent=11 // pred_check
          %p531 = pneg %p472
        $region38: #{moe_forward.1} parent=11 // pred_check_branch
          %533 = sbr.rel (%p531) target = $region40
        $region39: #{moe_forward.1} parent=11 // pred_region
          _
        $region40: #{moe_forward.1} parent=11 // pred_fallthru
          _
      $region12: #{moe_forward.1} parent=5 // pred_fallthru
        _
      %p534 = scmp.lt.s32.totalorder %s27, 4
      // Predicated region
      $region41: #{moe_forward.1} parent=5 // pred_check
        %p535 = pneg %p534
      $region42: #{moe_forward.1} parent=5 // pred_check_branch
        %537 = sbr.rel (%p535) target = $region44
      $region43: #{moe_forward.1} parent=5 // pred_region
        // Predicated region
        $region45: #{moe_forward.1} parent=43 // pred_check
          %p538 = pneg %p59
        $region46: #{moe_forward.1} parent=43 // pred_check_branch
          %540 = sbr.rel (%p538) target = $region48
        $region47: #{moe_forward.1} parent=43 // pred_region
          %p541 = scmp.lt.s32.totalorder %s34, 1
          %s542 = scalar_select %p541, %s34, 1
          %s543 = smul.addr %s542, 8
          %s544 = scalar_lea.vmem %s0, %s543
        $region48: #{moe_forward.1} parent=43 // pred_fallthru
          _
        // Predicated region
        $region49: #{moe_forward.1} parent=43 // pred_check
          %p545 = pneg %p169
        $region50: #{moe_forward.1} parent=43 // pred_check_branch
          %547 = sbr.rel (%p545) target = $region52
        $region51: #{moe_forward.1} parent=43 // pred_region
          %p548 = scmp.lt.s32.totalorder %s35, 1
          %s549 = scalar_select %p548, %s35, 1
          %s550 = smul.addr %s549, 4
          %s551 = smul.addr %s550, 4
          %s552 = scalar_lea.vmem %s5, %s551
        $region52: #{moe_forward.1} parent=43 // pred_fallthru
          _
        // Predicated region
        $region53: #{moe_forward.1} parent=43 // pred_check
          %p553 = pneg %p195
        $region54: #{moe_forward.1} parent=43 // pred_check_branch
          %555 = sbr.rel (%p553) target = $region56
        $region55: #{moe_forward.1} parent=43 // pred_region
          %p556 = scmp.lt.s32.totalorder %s35, 1
          %s557 = scalar_select %p556, %s35, 1
          %s558 = scalar_lea.vmem %s6, %s557
        $region56: #{moe_forward.1} parent=43 // pred_fallthru
          _
        // Predicated region
        $region57: #{moe_forward.1} parent=43 // pred_check
          %p559 = pneg %p221
        $region58: #{moe_forward.1} parent=43 // pred_check_branch
          %561 = sbr.rel (%p559) target = $region60
        $region59: #{moe_forward.1} parent=43 // pred_region
          %p562 = scmp.lt.s32.totalorder %s35, 1
          %s563 = scalar_select %p562, %s35, 1
          %s564 = smul.addr %s563, 4
          %s565 = smul.addr %s564, 4
          %s566 = scalar_lea.vmem %s7, %s565
        $region60: #{moe_forward.1} parent=43 // pred_fallthru
          _
        // Predicated region
        $region61: #{moe_forward.1} parent=43 // pred_check
          %p567 = pneg %p247
        $region62: #{moe_forward.1} parent=43 // pred_check_branch
          %569 = sbr.rel (%p567) target = $region64
        $region63: #{moe_forward.1} parent=43 // pred_region
          %p570 = scmp.lt.s32.totalorder %s35, 1
          %s571 = scalar_select %p570, %s35, 1
          %s572 = scalar_lea.vmem %s8, %s571
        $region64: #{moe_forward.1} parent=43 // pred_fallthru
          _
        // Predicated region
        $region65: #{moe_forward.1} parent=43 // pred_check
          %p573 = pneg %p273
        $region66: #{moe_forward.1} parent=43 // pred_check_branch
          %575 = sbr.rel (%p573) target = $region68
        $region67: #{moe_forward.1} parent=43 // pred_region
          %p576 = scmp.lt.s32.totalorder %s35, 1
          %s577 = scalar_select %p576, %s35, 1
          %s578 = smul.addr %s577, 4
          %s579 = smul.addr %s578, 8
          %s580 = scalar_lea.vmem %s9, %s579
        $region68: #{moe_forward.1} parent=43 // pred_fallthru
          _
        // Predicated region
        $region69: #{moe_forward.1} parent=43 // pred_check
          %p581 = pneg %p299
        $region70: #{moe_forward.1} parent=43 // pred_check_branch
          %583 = sbr.rel (%p581) target = $region72
        $region71: #{moe_forward.1} parent=43 // pred_region
          %p584 = scmp.lt.s32.totalorder %s35, 1
          %s585 = scalar_select %p584, %s35, 1
          %s586 = scalar_lea.vmem %s10, %s585
        $region72: #{moe_forward.1} parent=43 // pred_fallthru
          _
        // Predicated region
        $region73: #{moe_forward.1} parent=43 // pred_check
          %p587 = pneg %p325
        $region74: #{moe_forward.1} parent=43 // pred_check_branch
          %589 = sbr.rel (%p587) target = $region76
        $region75: #{moe_forward.1} parent=43 // pred_region
          %p590 = scmp.lt.s32.totalorder %s35, 1
          %s591 = scalar_select %p590, %s35, 1
          %s592 = smul.addr %s591, 4
          %s593 = smul.addr %s592, 4
          %s594 = scalar_lea.vmem %s11, %s593
        $region76: #{moe_forward.1} parent=43 // pred_fallthru
          _
        // Predicated region
        $region77: #{moe_forward.1} parent=43 // pred_check
          %p595 = pneg %p351
        $region78: #{moe_forward.1} parent=43 // pred_check_branch
          %597 = sbr.rel (%p595) target = $region80
        $region79: #{moe_forward.1} parent=43 // pred_region
          %p598 = scmp.lt.s32.totalorder %s35, 1
          %s599 = scalar_select %p598, %s35, 1
          %s600 = scalar_lea.vmem %s12, %s599
        $region80: #{moe_forward.1} parent=43 // pred_fallthru
          _
        // Predicated region
        $region81: #{moe_forward.1} parent=43 // pred_check
          %p601 = pneg %p377
        $region82: #{moe_forward.1} parent=43 // pred_check_branch
          %603 = sbr.rel (%p601) target = $region84
        $region83: #{moe_forward.1} parent=43 // pred_region
          %p604 = scmp.lt.s32.totalorder %s35, 1
          %s605 = scalar_select %p604, %s35, 1
          %s606 = smul.addr %s605, 16
          %s607 = smul.addr %s606, 4
          %s608 = scalar_lea.vmem %s13, %s607
        $region84: #{moe_forward.1} parent=43 // pred_fallthru
          _
        // Predicated region
        $region85: #{moe_forward.1} parent=43 // pred_check
          %p609 = pneg %p403
        $region86: #{moe_forward.1} parent=43 // pred_check_branch
          %611 = sbr.rel (%p609) target = $region88
        $region87: #{moe_forward.1} parent=43 // pred_region
          %p612 = scmp.lt.s32.totalorder %s35, 1
          %s613 = scalar_select %p612, %s35, 1
          %s614 = smul.addr %s613, 4
          %s615 = scalar_lea.vmem %s14, %s614
        $region88: #{moe_forward.1} parent=43 // pred_fallthru
          _
      $region44: #{moe_forward.1} parent=5 // pred_fallthru
        _
      %p616 = scmp.le.s32.totalorder 1, %s27
      %p617 = scmp.lt.s32.totalorder %s27, 5
      %p618 = pnand %p616, %p617
      %p619 = pneg %p618
      // Predicated region
      $region89: #{moe_forward.1} parent=5 // pred_check
        _
      $region90: #{moe_forward.1} parent=5 // pred_check_branch
        %621 = sbr.rel (%p618) target = $region92
      $region91: #{moe_forward.1} parent=5 // pred_region
        %s622 = ssub.s32 %s27, 1
        %p623 = scmp.lt.s32.totalorder %s36, 1
        %s624 = scalar_select %p623, %s36, 1
        %s625 = smul.addr %s624, 8
        %s626 = scalar_lea.vmem %s0, %s625
        %p627 = pneg %p65
        %p628 = pneg %p62
        %p629 = pneg %p86
        %p630 = pneg %p83
        %p631 = pneg %p107
        %p632 = pneg %p104
        %p633 = pneg %p128
        %p634 = pneg %p125
        %p635 = pneg %p149
        %p636 = pneg %p146
        %p637 = scmp.lt.s32.totalorder %s37, 1
        %s638 = scalar_select %p637, %s37, 1
        %s639 = smul.addr %s638, 4
        %s640 = smul.addr %s639, 4
        %s641 = scalar_lea.vmem %s5, %s640
        %p642 = pneg %p175
        %p643 = pneg %p172
        %p644 = scmp.lt.s32.totalorder %s37, 1
        %s645 = scalar_select %p644, %s37, 1
        %s646 = scalar_lea.vmem %s6, %s645
        %p647 = pneg %p201
        %p648 = pneg %p198
        %p649 = scmp.lt.s32.totalorder %s37, 1
        %s650 = scalar_select %p649, %s37, 1
        %s651 = smul.addr %s650, 4
        %s652 = smul.addr %s651, 4
        %s653 = scalar_lea.vmem %s7, %s652
        %p654 = pneg %p227
        %p655 = pneg %p224
        %p656 = scmp.lt.s32.totalorder %s37, 1
        %s657 = scalar_select %p656, %s37, 1
        %s658 = scalar_lea.vmem %s8, %s657
        %p659 = pneg %p253
        %p660 = pneg %p250
        %p661 = scmp.lt.s32.totalorder %s37, 1
        %s662 = scalar_select %p661, %s37, 1
        %s663 = smul.addr %s662, 4
        %s664 = smul.addr %s663, 8
        %s665 = scalar_lea.vmem %s9, %s664
        %p666 = pneg %p279
        %p667 = pneg %p276
        %p668 = scmp.lt.s32.totalorder %s37, 1
        %s669 = scalar_select %p668, %s37, 1
        %s670 = scalar_lea.vmem %s10, %s669
        %p671 = pneg %p305
        %p672 = pneg %p302
        %p673 = scmp.lt.s32.totalorder %s37, 1
        %s674 = scalar_select %p673, %s37, 1
        %s675 = smul.addr %s674, 4
        %s676 = smul.addr %s675, 4
        %s677 = scalar_lea.vmem %s11, %s676
        %p678 = pneg %p331
        %p679 = pneg %p328
        %p680 = scmp.lt.s32.totalorder %s37, 1
        %s681 = scalar_select %p680, %s37, 1
        %s682 = scalar_lea.vmem %s12, %s681
        %p683 = pneg %p357
        %p684 = pneg %p354
        %p685 = scmp.lt.s32.totalorder %s37, 1
        %s686 = scalar_select %p685, %s37, 1
        %s687 = smul.addr %s686, 16
        %s688 = smul.addr %s687, 4
        %s689 = scalar_lea.vmem %s13, %s688
        %p690 = pneg %p383
        %p691 = pneg %p380
        %p692 = scmp.lt.s32.totalorder %s37, 1
        %s693 = scalar_select %p692, %s37, 1
        %s694 = smul.addr %s693, 4
        %s695 = scalar_lea.vmem %s14, %s694
        %p696 = pneg %p409
        %p697 = pneg %p406
        %p698 = pneg %p430
        %p699 = pneg %p427
        %p700 = pneg %p451
        %p701 = pneg %p448
        %p702 = pneg %p472
        %p703 = pneg %p469
        %p704 = pneg %p498
        %p705 = pneg %p495
        %s706 = sand.u32 %s485, 1
        %s707 = scalar_lea.sflag [#allocation4], %s706
        %s708 = sand.u32 %s485, 1
        %s709 = scalar_lea.vmem [#allocation3], %s708
        %p710 = scmp.lt.s32.totalorder %s36, 1
        %s711 = scalar_select %p710, %s36, 1
        %s712 = smul.addr %s711, 8
        %s713 = scalar_lea.vmem %s0, %s712
        %p714 = scmp.lt.s32.totalorder %s37, 1
        %s715 = scalar_select %p714, %s37, 1
        %s716 = smul.addr %s715, 4
        %s717 = smul.addr %s716, 4
        %s718 = scalar_lea.vmem %s5, %s717
        %p719 = scmp.lt.s32.totalorder %s37, 1
        %s720 = scalar_select %p719, %s37, 1
        %s721 = scalar_lea.vmem %s6, %s720
        %p722 = scmp.lt.s32.totalorder %s37, 1
        %s723 = scalar_select %p722, %s37, 1
        %s724 = smul.addr %s723, 4
        %s725 = smul.addr %s724, 4
        %s726 = scalar_lea.vmem %s7, %s725
        %p727 = scmp.lt.s32.totalorder %s37, 1
        %s728 = scalar_select %p727, %s37, 1
        %s729 = scalar_lea.vmem %s8, %s728
        %p730 = scmp.lt.s32.totalorder %s37, 1
        %s731 = scalar_select %p730, %s37, 1
        %s732 = smul.addr %s731, 4
        %s733 = smul.addr %s732, 8
        %s734 = scalar_lea.vmem %s9, %s733
        %p735 = scmp.lt.s32.totalorder %s37, 1
        %s736 = scalar_select %p735, %s37, 1
        %s737 = scalar_lea.vmem %s10, %s736
        %p738 = scmp.lt.s32.totalorder %s37, 1
        %s739 = scalar_select %p738, %s37, 1
        %s740 = smul.addr %s739, 4
        %s741 = smul.addr %s740, 4
        %s742 = scalar_lea.vmem %s11, %s741
        %p743 = scmp.lt.s32.totalorder %s37, 1
        %s744 = scalar_select %p743, %s37, 1
        %s745 = scalar_lea.vmem %s12, %s744
        %p746 = scmp.lt.s32.totalorder %s37, 1
        %s747 = scalar_select %p746, %s37, 1
        %s748 = smul.addr %s747, 16
        %s749 = smul.addr %s748, 4
        %s750 = scalar_lea.vmem %s13, %s749
        %p751 = scmp.lt.s32.totalorder %s37, 1
        %s752 = scalar_select %p751, %s37, 1
        %s753 = smul.addr %s752, 4
        %s754 = scalar_lea.vmem %s14, %s753
        %p756 = scmp.eq.s32.totalorder %s37, 0
        // Predicated region
        $region93: #{moe_forward.1} parent=91 // pred_check
          %p757 = pneg %p756
        $region94: #{moe_forward.1} parent=91 // pred_check_branch
          %759 = sbr.rel (%p757) target = $region96
        $region95: #{moe_forward.1} parent=91 // pred_region
          %v760 = vld [vmem:[%s713] sm:$0xff]
          %vm761 = vcmask 261120
          %762 = vst.msk [vmem:[#allocation2] sm:$0xff] %vm761, %v760
        $region96: #{moe_forward.1} parent=91 // pred_fallthru
          _
        %v763 = vld [vmem:[#allocation2] sm:$0xff]
        %v764 = vld [vmem:[%s1] sm:$0x1]
        %v765 = vld [vmem:[%s2] sm:$0x1]
        %vm766 = vcmask 261120
        %v767 = vsel %vm766, %v763, 0.0
        %768 = vadd.xlane.f32.xlu0 %v767
        %v769 = vpop.xlane.xlu0 %768
        %v770 = vrcp.pop 32.0
        %v771 = vmul.f32 %v769, %v770
        %v772 = vsub.f32 %v763, %v771
        %v773 = vmul.f32 %v772, %v772
        %v774 = vsel %vm766, %v773, 0.0
        %775 = vadd.xlane.f32.xlu0 %v774
        %v776 = vpop.xlane.xlu0 %775
        %v777 = vmul.f32 %v776, %v770
        %v778 = vadd.f32 %v777, 1e-05
        %v779 = vrsqrt.pop %v778
        %v780 = vmul.f32 %v772, %v779
        %v782 = vlaneseq
        %v783 = vshrl.u32 %v782, 7
        %v784 = vsub.s32 0, %v783
        %v785 = vrot.slane %v764, %v784
        %v787 = vmul.f32 %v780, %v785
        %v789 = vlaneseq
        %v790 = vshrl.u32 %v789, 7
        %v791 = vsub.s32 0, %v790
        %v792 = vrot.slane %v765, %v791
        %v794 = vadd.f32 %v787, %v792
        %v795 = vpack.c.bf16 %v794, %v794
        %v796 = vld [vmem:[%s718] sm:$0xf]
        %v797 = vld [vmem:[%s718 + $0x4] sm:$0xf]
        %v798 = vld [vmem:[%s718 + $0x8] sm:$0xf]
        %v799 = vld [vmem:[%s718 + $0xc] sm:$0xf]
        %v800 = vld [vmem:[%s721] sm:$0x1]
        %v802 = vlaneseq
        %v803 = vshrl.u32 %v802, 7
        %v804 = vsub.s32 0, %v803
        %v805 = vrot.slane %v800, %v804
        %v811 = vunpack.c.l.b16 %v796
        %v812 = vunpack.c.l.b16 %v797
        %v813 = vunpack.c.l.b16 %v798
        %v814 = vunpack.c.l.b16 %v799
        %v815 = vpack.c.b16 %v812, %v811
        %v816 = vpack.c.b16 %v814, %v813
        %v820 = vsel %vm766, %v795, 0
        %822 = vmatprep.subr.bf16.mxu0 0
        %823 = vmatpush1.bf16.msra.mxu0 %v815
        %824 = vmatprep.subr.bf16.mxu0 0
        %825 = vmatpush1.bf16.msra.mxu0 %v816
        %826 = vmatprep.subr.bf16.mxu0 0
        %827 = vmatpush1.bf16.msra.mxu0 0
        %828 = vmatprep.subr.bf16.mxu0 0
        %829 = vmatpush1.bf16.msra.mxu0 0
        %830 = vmatprep.subr.bf16.mxu0 0
        %831 = vmatpush1.bf16.msra.mxu0 0
        %832 = vmatprep.subr.bf16.mxu0 0
        %833 = vmatpush1.bf16.msra.mxu0 0
        %834 = vmatprep.subr.bf16.mxu0 0
        %835 = vmatpush1.bf16.msra.mxu0 0
        %836 = vmatprep.subr.bf16.mxu0 0
        %837 = vmatpush1.bf16.msra.mxu0 0
        %838 = vmatprep.subr.bf16.mxu0 0
        %839 = vmatpush1.bf16.msra.mxu0 0
        %840 = vmatprep.subr.bf16.mxu0 0
        %841 = vmatpush1.bf16.msra.mxu0 0
        %842 = vmatprep.subr.bf16.mxu0 0
        %843 = vmatpush1.bf16.msra.mxu0 0
        %844 = vmatprep.subr.bf16.mxu0 0
        %845 = vmatpush1.bf16.msra.mxu0 0
        %846 = vmatprep.subr.bf16.mxu0 0
        %847 = vmatpush1.bf16.msra.mxu0 0
        %848 = vmatprep.subr.bf16.mxu0 0
        %849 = vmatpush1.bf16.msra.mxu0 0
        %850 = vmatprep.subr.bf16.mxu0 0
        %851 = vmatpush1.bf16.msra.mxu0 0
        %852 = vmatprep.subr.bf16.mxu0 0
        %853 = vmatpush1.bf16.msra.mxu0 0
        %854 = vmatprep.mubr.bf16.mxu0 0
        %855 = vmatmul.mubr.bf16.gmra.mrb[0].mxu0 %v820
        %v856 = vpop.f32.mrb[0].mxu0
        %v857 = vadd.f32 %v805, %v856
        %v858 = vpop.f32.mrb[0].mxu0
        %v859 = vpop.f32.mrb[0].mxu0
        %v860 = vpop.f32.mrb[0].mxu0
        %861 = vdwg.mxu0
        %v862 = vpack.c.bf16 %v857, %v857
        %864 = vrot.lane.b32.xlu0 %v862, 96
        %v865 = vpop.permute.xlu0 %864
        %vm866 = vcmask 64512
        %v868 = vsel %vm866, %v862, 0
        %v871 = vsel %vm866, %v865, 0
        %873 = vmatprep.subr.bf16.mxu0 0
        %874 = vmatpush1.bf16.xpose.msra.mxu0 %v871
        %875 = vmatprep.subr.bf16.mxu0 0
        %876 = vmatpush1.bf16.xpose.msra.mxu0 0
        %877 = vmatprep.subr.bf16.mxu0 0
        %878 = vmatpush1.bf16.xpose.msra.mxu0 0
        %879 = vmatprep.subr.bf16.mxu0 0
        %880 = vmatpush1.bf16.xpose.msra.mxu0 0
        %881 = vmatprep.subr.bf16.mxu0 0
        %882 = vmatpush1.bf16.xpose.msra.mxu0 0
        %883 = vmatprep.subr.bf16.mxu0 0
        %884 = vmatpush1.bf16.xpose.msra.mxu0 0
        %885 = vmatprep.subr.bf16.mxu0 0
        %886 = vmatpush1.bf16.xpose.msra.mxu0 0
        %887 = vmatprep.subr.bf16.mxu0 0
        %888 = vmatpush1.bf16.xpose.msra.mxu0 0
        %889 = vmatprep.subr.bf16.mxu0 0
        %890 = vmatpush1.bf16.xpose.msra.mxu0 0
        %891 = vmatprep.subr.bf16.mxu0 0
        %892 = vmatpush1.bf16.xpose.msra.mxu0 0
        %893 = vmatprep.subr.bf16.mxu0 0
        %894 = vmatpush1.bf16.xpose.msra.mxu0 0
        %895 = vmatprep.subr.bf16.mxu0 0
        %896 = vmatpush1.bf16.xpose.msra.mxu0 0
        %897 = vmatprep.subr.bf16.mxu0 0
        %898 = vmatpush1.bf16.xpose.msra.mxu0 0
        %899 = vmatprep.subr.bf16.mxu0 0
        %900 = vmatpush1.bf16.xpose.msra.mxu0 0
        %901 = vmatprep.subr.bf16.mxu0 0
        %902 = vmatpush1.bf16.xpose.msra.mxu0 0
        %903 = vmatprep.subr.bf16.mxu0 0
        %904 = vmatpush1.bf16.xpose.msra.mxu0 0
        %905 = vmatprep.mubr.bf16.mxu0 0
        %906 = vmatmul.mubr.bf16.gmra.mrb[0].mxu0 %v868
        %v907 = vpop.f32.mrb[0].mxu0
        %v908 = vadd.f32 0.0, %v907
        %v909 = vpop.f32.mrb[0].mxu0
        %v910 = vpop.f32.mrb[0].mxu0
        %v911 = vpop.f32.mrb[0].mxu0
        %912 = vdwg.mxu0
        %v913 = vmul.f32 %v908, 0.35355338
        %v914 = vsel %vm866, %v913, -inf
        %915 = vmax.xlane.f32.xlu0 %v914
        %v916 = vpop.xlane.xlu0 %915
        %v917 = vsub.f32 %v913, %v916
        %v918 = vmul.f32 %v917, 1.442695
        %v919 = vpow.pop %v918
        %v920 = vsel %vm866, %v919, 0.0
        %921 = vadd.xlane.f32.xlu0 %v920
        %v922 = vpop.xlane.xlu0 %921
        %v923 = vrcp.pop %v922
        %v924 = vmul.f32 %v919, %v923
        %v925 = vpack.c.bf16 %v924, %v924
        %926 = vrot.lane.b32.xlu0 %v862, 64
        %v927 = vpop.permute.xlu0 %926
        %v929 = vsel %vm866, %v925, 0
        %vm931 = vcmask 1043456
        %v933 = vsel %vm931, %v927, 0
        %935 = vmatprep.subr.bf16.mxu0 0
        %936 = vmatpush1.bf16.msra.mxu0 %v933
        %937 = vmatprep.subr.bf16.mxu0 0
        %938 = vmatpush1.bf16.msra.mxu0 0
        %939 = vmatprep.subr.bf16.mxu0 0
        %940 = vmatpush1.bf16.msra.mxu0 0
        %941 = vmatprep.subr.bf16.mxu0 0
        %942 = vmatpush1.bf16.msra.mxu0 0
        %943 = vmatprep.subr.bf16.mxu0 0
        %944 = vmatpush1.bf16.msra.mxu0 0
        %945 = vmatprep.subr.bf16.mxu0 0
        %946 = vmatpush1.bf16.msra.mxu0 0
        %947 = vmatprep.subr.bf16.mxu0 0
        %948 = vmatpush1.bf16.msra.mxu0 0
        %949 = vmatprep.subr.bf16.mxu0 0
        %950 = vmatpush1.bf16.msra.mxu0 0
        %951 = vmatprep.subr.bf16.mxu0 0
        %952 = vmatpush1.bf16.msra.mxu0 0
        %953 = vmatprep.subr.bf16.mxu0 0
        %954 = vmatpush1.bf16.msra.mxu0 0
        %955 = vmatprep.subr.bf16.mxu0 0
        %956 = vmatpush1.bf16.msra.mxu0 0
        %957 = vmatprep.subr.bf16.mxu0 0
        %958 = vmatpush1.bf16.msra.mxu0 0
        %959 = vmatprep.subr.bf16.mxu0 0
        %960 = vmatpush1.bf16.msra.mxu0 0
        %961 = vmatprep.subr.bf16.mxu0 0
        %962 = vmatpush1.bf16.msra.mxu0 0
        %963 = vmatprep.subr.bf16.mxu0 0
        %964 = vmatpush1.bf16.msra.mxu0 0
        %965 = vmatprep.subr.bf16.mxu0 0
        %966 = vmatpush1.bf16.msra.mxu0 0
        %967 = vmatprep.mubr.bf16.mxu0 0
        %968 = vmatmul.mubr.bf16.gmra.mrb[0].mxu0 %v929
        %v969 = vpop.f32.mrb[0].mxu0
        %v970 = vadd.f32 0.0, %v969
        %v971 = vpop.f32.mrb[0].mxu0
        %v972 = vpop.f32.mrb[0].mxu0
        %v973 = vpop.f32.mrb[0].mxu0
        %974 = vdwg.mxu0
        %975 = vrot.lane.b32.xlu0 %v862, 120
        %v976 = vpop.permute.xlu0 %975
        %977 = vrot.lane.b32.xlu0 %v862, 88
        %v978 = vpop.permute.xlu0 %977
        %v980 = vsel %vm866, %v976, 0
        %v983 = vsel %vm866, %v978, 0
        %985 = vmatprep.subr.bf16.mxu0 0
        %986 = vmatpush1.bf16.xpose.msra.mxu0 %v983
        %987 = vmatprep.subr.bf16.mxu0 0
        %988 = vmatpush1.bf16.xpose.msra.mxu0 0
        %989 = vmatprep.subr.bf16.mxu0 0
        %990 = vmatpush1.bf16.xpose.msra.mxu0 0
        %991 = vmatprep.subr.bf16.mxu0 0
        %992 = vmatpush1.bf16.xpose.msra.mxu0 0
        %993 = vmatprep.subr.bf16.mxu0 0
        %994 = vmatpush1.bf16.xpose.msra.mxu0 0
        %995 = vmatprep.subr.bf16.mxu0 0
        %996 = vmatpush1.bf16.xpose.msra.mxu0 0
        %997 = vmatprep.subr.bf16.mxu0 0
        %998 = vmatpush1.bf16.xpose.msra.mxu0 0
        %999 = vmatprep.subr.bf16.mxu0 0
        %1000 = vmatpush1.bf16.xpose.msra.mxu0 0
        %1001 = vmatprep.subr.bf16.mxu0 0
        %1002 = vmatpush1.bf16.xpose.msra.mxu0 0
        %1003 = vmatprep.subr.bf16.mxu0 0
        %1004 = vmatpush1.bf16.xpose.msra.mxu0 0
        %1005 = vmatprep.subr.bf16.mxu0 0
        %1006 = vmatpush1.bf16.xpose.msra.mxu0 0
        %1007 = vmatprep.subr.bf16.mxu0 0
        %1008 = vmatpush1.bf16.xpose.msra.mxu0 0
        %1009 = vmatprep.subr.bf16.mxu0 0
        %1010 = vmatpush1.bf16.xpose.msra.mxu0 0
        %1011 = vmatprep.subr.bf16.mxu0 0
        %1012 = vmatpush1.bf16.xpose.msra.mxu0 0
        %1013 = vmatprep.subr.bf16.mxu0 0
        %1014 = vmatpush1.bf16.xpose.msra.mxu0 0
        %1015 = vmatprep.subr.bf16.mxu0 0
        %1016 = vmatpush1.bf16.xpose.msra.mxu0 0
        %1017 = vmatprep.mubr.bf16.mxu0 0
        %1018 = vmatmul.mubr.bf16.gmra.mrb[0].mxu0 %v980
        %v1019 = vpop.f32.mrb[0].mxu0
        %v1020 = vadd.f32 0.0, %v1019
        %v1021 = vpop.f32.mrb[0].mxu0
        %v1022 = vpop.f32.mrb[0].mxu0
        %v1023 = vpop.f32.mrb[0].mxu0
        %1024 = vdwg.mxu0
        %v1025 = vmul.f32 %v1020, 0.35355338
        %v1026 = vsel %vm866, %v1025, -inf
        %1027 = vmax.xlane.f32.xlu0 %v1026
        %v1028 = vpop.xlane.xlu0 %1027
        %v1029 = vsub.f32 %v1025, %v1028
        %v1030 = vmul.f32 %v1029, 1.442695
        %v1031 = vpow.pop %v1030
        %v1032 = vsel %vm866, %v1031, 0.0
        %1033 = vadd.xlane.f32.xlu0 %v1032
        %v1034 = vpop.xlane.xlu0 %1033
        %v1035 = vrcp.pop %v1034
        %v1036 = vmul.f32 %v1031, %v1035
        %v1037 = vpack.c.bf16 %v1036, %v1036
        %1038 = vrot.lane.b32.xlu0 %v862, 56
        %v1039 = vpop.permute.xlu0 %1038
        %v1041 = vsel %vm866, %v1037, 0
        %v1044 = vsel %vm931, %v1039, 0
        %1046 = vmatprep.subr.bf16.mxu0 0
        %1047 = vmatpush1.bf16.msra.mxu0 %v1044
        %1048 = vmatprep.subr.bf16.mxu0 0
        %1049 = vmatpush1.bf16.msra.mxu0 0
        %1050 = vmatprep.subr.bf16.mxu0 0
        %1051 = vmatpush1.bf16.msra.mxu0 0
        %1052 = vmatprep.subr.bf16.mxu0 0
        %1053 = vmatpush1.bf16.msra.mxu0 0
        %1054 = vmatprep.subr.bf16.mxu0 0
        %1055 = vmatpush1.bf16.msra.mxu0 0
        %1056 = vmatprep.subr.bf16.mxu0 0
        %1057 = vmatpush1.bf16.msra.mxu0 0
        %1058 = vmatprep.subr.bf16.mxu0 0
        %1059 = vmatpush1.bf16.msra.mxu0 0
        %1060 = vmatprep.subr.bf16.mxu0 0
        %1061 = vmatpush1.bf16.msra.mxu0 0
        %1062 = vmatprep.subr.bf16.mxu0 0
        %1063 = vmatpush1.bf16.msra.mxu0 0
        %1064 = vmatprep.subr.bf16.mxu0 0
        %1065 = vmatpush1.bf16.msra.mxu0 0
        %1066 = vmatprep.subr.bf16.mxu0 0
        %1067 = vmatpush1.bf16.msra.mxu0 0
        %1068 = vmatprep.subr.bf16.mxu0 0
        %1069 = vmatpush1.bf16.msra.mxu0 0
        %1070 = vmatprep.subr.bf16.mxu0 0
        %1071 = vmatpush1.bf16.msra.mxu0 0
        %1072 = vmatprep.subr.bf16.mxu0 0
        %1073 = vmatpush1.bf16.msra.mxu0 0
        %1074 = vmatprep.subr.bf16.mxu0 0
        %1075 = vmatpush1.bf16.msra.mxu0 0
        %1076 = vmatprep.subr.bf16.mxu0 0
        %1077 = vmatpush1.bf16.msra.mxu0 0
        %1078 = vmatprep.mubr.bf16.mxu0 0
        %1079 = vmatmul.mubr.bf16.gmra.mrb[0].mxu0 %v1041
        %v1080 = vpop.f32.mrb[0].mxu0
        %v1081 = vadd.f32 0.0, %v1080
        %v1082 = vpop.f32.mrb[0].mxu0
        %v1083 = vpop.f32.mrb[0].mxu0
        %v1084 = vpop.f32.mrb[0].mxu0
        %1085 = vdwg.mxu0
        %1086 = vrot.lane.b32.xlu0 %v862, 112
        %v1087 = vpop.permute.xlu0 %1086
        %1088 = vrot.lane.b32.xlu0 %v862, 80
        %v1089 = vpop.permute.xlu0 %1088
        %v1091 = vsel %vm866, %v1087, 0
        %v1094 = vsel %vm866, %v1089, 0
        %1096 = vmatprep.subr.bf16.mxu0 0
        %1097 = vmatpush1.bf16.xpose.msra.mxu0 %v1094
        %1098 = vmatprep.subr.bf16.mxu0 0
        %1099 = vmatpush1.bf16.xpose.msra.mxu0 0
        %1100 = vmatprep.subr.bf16.mxu0 0
        %1101 = vmatpush1.bf16.xpose.msra.mxu0 0
        %1102 = vmatprep.subr.bf16.mxu0 0
        %1103 = vmatpush1.bf16.xpose.msra.mxu0 0
        %1104 = vmatprep.subr.bf16.mxu0 0
        %1105 = vmatpush1.bf16.xpose.msra.mxu0 0
        %1106 = vmatprep.subr.bf16.mxu0 0
        %1107 = vmatpush1.bf16.xpose.msra.mxu0 0
        %1108 = vmatprep.subr.bf16.mxu0 0
        %1109 = vmatpush1.bf16.xpose.msra.mxu0 0
        %1110 = vmatprep.subr.bf16.mxu0 0
        %1111 = vmatpush1.bf16.xpose.msra.mxu0 0
        %1112 = vmatprep.subr.bf16.mxu0 0
        %1113 = vmatpush1.bf16.xpose.msra.mxu0 0
        %1114 = vmatprep.subr.bf16.mxu0 0
        %1115 = vmatpush1.bf16.xpose.msra.mxu0 0
        %1116 = vmatprep.subr.bf16.mxu0 0
        %1117 = vmatpush1.bf16.xpose.msra.mxu0 0
        %1118 = vmatprep.subr.bf16.mxu0 0
        %1119 = vmatpush1.bf16.xpose.msra.mxu0 0
        %1120 = vmatprep.subr.bf16.mxu0 0
        %1121 = vmatpush1.bf16.xpose.msra.mxu0 0
        %1122 = vmatprep.subr.bf16.mxu0 0
        %1123 = vmatpush1.bf16.xpose.msra.mxu0 0
        %1124 = vmatprep.subr.bf16.mxu0 0
        %1125 = vmatpush1.bf16.xpose.msra.mxu0 0
        %1126 = vmatprep.subr.bf16.mxu0 0
        %1127 = vmatpush1.bf16.xpose.msra.mxu0 0
        %1128 = vmatprep.mubr.bf16.mxu0 0
        %1129 = vmatmul.mubr.bf16.gmra.mrb[0].mxu0 %v1091
        %v1130 = vpop.f32.mrb[0].mxu0
        %v1131 = vadd.f32 0.0, %v1130
        %v1132 = vpop.f32.mrb[0].mxu0
        %v1133 = vpop.f32.mrb[0].mxu0
        %v1134 = vpop.f32.mrb[0].mxu0
        %1135 = vdwg.mxu0
        %v1136 = vmul.f32 %v1131, 0.35355338
        %v1137 = vsel %vm866, %v1136, -inf
        %1138 = vmax.xlane.f32.xlu0 %v1137
        %v1139 = vpop.xlane.xlu0 %1138
        %v1140 = vsub.f32 %v1136, %v1139
        %v1141 = vmul.f32 %v1140, 1.442695
        %v1142 = vpow.pop %v1141
        %v1143 = vsel %vm866, %v1142, 0.0
        %1144 = vadd.xlane.f32.xlu0 %v1143
        %v1145 = vpop.xlane.xlu0 %1144
        %v1146 = vrcp.pop %v1145
        %v1147 = vmul.f32 %v1142, %v1146
        %v1148 = vpack.c.bf16 %v1147, %v1147
        %1149 = vrot.lane.b32.xlu0 %v862, 48
        %v1150 = vpop.permute.xlu0 %1149
        %v1152 = vsel %vm866, %v1148, 0
        %v1155 = vsel %vm931, %v1150, 0
        %1157 = vmatprep.subr.bf16.mxu0 0
        %1158 = vmatpush1.bf16.msra.mxu0 %v1155
        %1159 = vmatprep.subr.bf16.mxu0 0
        %1160 = vmatpush1.bf16.msra.mxu0 0
        %1161 = vmatprep.subr.bf16.mxu0 0
        %1162 = vmatpush1.bf16.msra.mxu0 0
        %1163 = vmatprep.subr.bf16.mxu0 0
        %1164 = vmatpush1.bf16.msra.mxu0 0
        %1165 = vmatprep.subr.bf16.mxu0 0
        %1166 = vmatpush1.bf16.msra.mxu0 0
        %1167 = vmatprep.subr.bf16.mxu0 0
        %1168 = vmatpush1.bf16.msra.mxu0 0
        %1169 = vmatprep.subr.bf16.mxu0 0
        %1170 = vmatpush1.bf16.msra.mxu0 0
        %1171 = vmatprep.subr.bf16.mxu0 0
        %1172 = vmatpush1.bf16.msra.mxu0 0
        %1173 = vmatprep.subr.bf16.mxu0 0
        %1174 = vmatpush1.bf16.msra.mxu0 0
        %1175 = vmatprep.subr.bf16.mxu0 0
        %1176 = vmatpush1.bf16.msra.mxu0 0
        %1177 = vmatprep.subr.bf16.mxu0 0
        %1178 = vmatpush1.bf16.msra.mxu0 0
        %1179 = vmatprep.subr.bf16.mxu0 0
        %1180 = vmatpush1.bf16.msra.mxu0 0
        %1181 = vmatprep.subr.bf16.mxu0 0
        %1182 = vmatpush1.bf16.msra.mxu0 0
        %1183 = vmatprep.subr.bf16.mxu0 0
        %1184 = vmatpush1.bf16.msra.mxu0 0
        %1185 = vmatprep.subr.bf16.mxu0 0
        %1186 = vmatpush1.bf16.msra.mxu0 0
        %1187 = vmatprep.subr.bf16.mxu0 0
        %1188 = vmatpush1.bf16.msra.mxu0 0
        %1189 = vmatprep.mubr.bf16.mxu0 0
        %1190 = vmatmul.mubr.bf16.gmra.mrb[0].mxu0 %v1152
        %v1191 = vpop.f32.mrb[0].mxu0
        %v1192 = vadd.f32 0.0, %v1191
        %v1193 = vpop.f32.mrb[0].mxu0
        %v1194 = vpop.f32.mrb[0].mxu0
        %v1195 = vpop.f32.mrb[0].mxu0
        %1196 = vdwg.mxu0
        %1197 = vrot.lane.b32.xlu0 %v862, 104
        %v1198 = vpop.permute.xlu0 %1197
        %1199 = vrot.lane.b32.xlu0 %v862, 72
        %v1200 = vpop.permute.xlu0 %1199
        %v1202 = vsel %vm866, %v1198, 0
        %v1205 = vsel %vm866, %v1200, 0
        %1207 = vmatprep.subr.bf16.mxu0 0
        %1208 = vmatpush1.bf16.xpose.msra.mxu0 %v1205
        %1209 = vmatprep.subr.bf16.mxu0 0
        %1210 = vmatpush1.bf16.xpose.msra.mxu0 0
        %1211 = vmatprep.subr.bf16.mxu0 0
        %1212 = vmatpush1.bf16.xpose.msra.mxu0 0
        %1213 = vmatprep.subr.bf16.mxu0 0
        %1214 = vmatpush1.bf16.xpose.msra.mxu0 0
        %1215 = vmatprep.subr.bf16.mxu0 0
        %1216 = vmatpush1.bf16.xpose.msra.mxu0 0
        %1217 = vmatprep.subr.bf16.mxu0 0
        %1218 = vmatpush1.bf16.xpose.msra.mxu0 0
        %1219 = vmatprep.subr.bf16.mxu0 0
        %1220 = vmatpush1.bf16.xpose.msra.mxu0 0
        %1221 = vmatprep.subr.bf16.mxu0 0
        %1222 = vmatpush1.bf16.xpose.msra.mxu0 0
        %1223 = vmatprep.subr.bf16.mxu0 0
        %1224 = vmatpush1.bf16.xpose.msra.mxu0 0
        %1225 = vmatprep.subr.bf16.mxu0 0
        %1226 = vmatpush1.bf16.xpose.msra.mxu0 0
        %1227 = vmatprep.subr.bf16.mxu0 0
        %1228 = vmatpush1.bf16.xpose.msra.mxu0 0
        %1229 = vmatprep.subr.bf16.mxu0 0
        %1230 = vmatpush1.bf16.xpose.msra.mxu0 0
        %1231 = vmatprep.subr.bf16.mxu0 0
        %1232 = vmatpush1.bf16.xpose.msra.mxu0 0
        %1233 = vmatprep.subr.bf16.mxu0 0
        %1234 = vmatpush1.bf16.xpose.msra.mxu0 0
        %1235 = vmatprep.subr.bf16.mxu0 0
        %1236 = vmatpush1.bf16.xpose.msra.mxu0 0
        %1237 = vmatprep.subr.bf16.mxu0 0
        %1238 = vmatpush1.bf16.xpose.msra.mxu0 0
        %1239 = vmatprep.mubr.bf16.mxu0 0
        %1240 = vmatmul.mubr.bf16.gmra.mrb[0].mxu0 %v1202
        %v1241 = vpop.f32.mrb[0].mxu0
        %v1242 = vadd.f32 0.0, %v1241
        %v1243 = vpop.f32.mrb[0].mxu0
        %v1244 = vpop.f32.mrb[0].mxu0
        %v1245 = vpop.f32.mrb[0].mxu0
        %1246 = vdwg.mxu0
        %v1247 = vmul.f32 %v1242, 0.35355338
        %v1248 = vsel %vm866, %v1247, -inf
        %1249 = vmax.xlane.f32.xlu0 %v1248
        %v1250 = vpop.xlane.xlu0 %1249
        %v1251 = vsub.f32 %v1247, %v1250
        %v1252 = vmul.f32 %v1251, 1.442695
        %v1253 = vpow.pop %v1252
        %v1254 = vsel %vm866, %v1253, 0.0
        %1255 = vadd.xlane.f32.xlu0 %v1254
        %v1256 = vpop.xlane.xlu0 %1255
        %v1257 = vrcp.pop %v1256
        %v1258 = vmul.f32 %v1253, %v1257
        %v1259 = vpack.c.bf16 %v1258, %v1258
        %1260 = vrot.lane.b32.xlu0 %v862, 40
        %v1261 = vpop.permute.xlu0 %1260
        %v1263 = vsel %vm866, %v1259, 0
        %v1266 = vsel %vm931, %v1261, 0
        %1268 = vmatprep.subr.bf16.mxu0 0
        %1269 = vmatpush1.bf16.msra.mxu0 %v1266
        %1270 = vmatprep.subr.bf16.mxu0 0
        %1271 = vmatpush1.bf16.msra.mxu0 0
        %1272 = vmatprep.subr.bf16.mxu0 0
        %1273 = vmatpush1.bf16.msra.mxu0 0
        %1274 = vmatprep.subr.bf16.mxu0 0
        %1275 = vmatpush1.bf16.msra.mxu0 0
        %1276 = vmatprep.subr.bf16.mxu0 0
        %1277 = vmatpush1.bf16.msra.mxu0 0
        %1278 = vmatprep.subr.bf16.mxu0 0
        %1279 = vmatpush1.bf16.msra.mxu0 0
        %1280 = vmatprep.subr.bf16.mxu0 0
        %1281 = vmatpush1.bf16.msra.mxu0 0
        %1282 = vmatprep.subr.bf16.mxu0 0
        %1283 = vmatpush1.bf16.msra.mxu0 0
        %1284 = vmatprep.subr.bf16.mxu0 0
        %1285 = vmatpush1.bf16.msra.mxu0 0
        %1286 = vmatprep.subr.bf16.mxu0 0
        %1287 = vmatpush1.bf16.msra.mxu0 0
        %1288 = vmatprep.subr.bf16.mxu0 0
        %1289 = vmatpush1.bf16.msra.mxu0 0
        %1290 = vmatprep.subr.bf16.mxu0 0
        %1291 = vmatpush1.bf16.msra.mxu0 0
        %1292 = vmatprep.subr.bf16.mxu0 0
        %1293 = vmatpush1.bf16.msra.mxu0 0
        %1294 = vmatprep.subr.bf16.mxu0 0
        %1295 = vmatpush1.bf16.msra.mxu0 0
        %1296 = vmatprep.subr.bf16.mxu0 0
        %1297 = vmatpush1.bf16.msra.mxu0 0
        %1298 = vmatprep.subr.bf16.mxu0 0
        %1299 = vmatpush1.bf16.msra.mxu0 0
        %1300 = vmatprep.mubr.bf16.mxu0 0
        %1301 = vmatmul.mubr.bf16.gmra.mrb[0].mxu0 %v1263
        %v1302 = vpop.f32.mrb[0].mxu0
        %v1303 = vadd.f32 0.0, %v1302
        %v1304 = vpop.f32.mrb[0].mxu0
        %v1305 = vpop.f32.mrb[0].mxu0
        %v1306 = vpop.f32.mrb[0].mxu0
        %1307 = vdwg.mxu0
        %1309 = vrot.lane.b32.xlu0 %v1081, 8
        %v1310 = vpop.permute.xlu0 %1309
        %1313 = vrot.lane.b32.xlu0 %v1192, 16
        %v1314 = vpop.permute.xlu0 %1313
        %1317 = vrot.lane.b32.xlu0 %v1303, 24
        %v1318 = vpop.permute.xlu0 %1317
        %v1320 = vsel %vm866, %v970, %v1310
        %vm1321 = vcmask 130048
        %v1322 = vsel %vm1321, %v1320, %v1314
        %vm1323 = vcmask 195584
        %v1324 = vsel %vm1323, %v1322, %v1318
        %v1325 = vpack.c.bf16 %v1324, %v1324
        %v1326 = vld [vmem:[%s726] sm:$0xf]
        %v1327 = vld [vmem:[%s726 + $0x4] sm:$0xf]
        %v1328 = vld [vmem:[%s726 + $0x8] sm:$0xf]
        %v1329 = vld [vmem:[%s726 + $0xc] sm:$0xf]
        %v1330 = vld [vmem:[%s729] sm:$0x1]
        %v1332 = vlaneseq
        %v1333 = vshrl.u32 %v1332, 7
        %v1334 = vsub.s32 0, %v1333
        %v1335 = vrot.slane %v1330, %v1334
        %v1341 = vunpack.c.l.b16 %v1326
        %v1342 = vunpack.c.l.b16 %v1327
        %v1343 = vunpack.c.l.b16 %v1328
        %v1344 = vunpack.c.l.b16 %v1329
        %v1345 = vpack.c.b16 %v1342, %v1341
        %v1346 = vpack.c.b16 %v1344, %v1343
        %v1350 = vsel %vm766, %v1325, 0
        %1352 = vmatprep.subr.bf16.mxu0 0
        %1353 = vmatpush1.bf16.msra.mxu0 %v1345
        %1354 = vmatprep.subr.bf16.mxu0 0
        %1355 = vmatpush1.bf16.msra.mxu0 %v1346
        %1356 = vmatprep.subr.bf16.mxu0 0
        %1357 = vmatpush1.bf16.msra.mxu0 0
        %1358 = vmatprep.subr.bf16.mxu0 0
        %1359 = vmatpush1.bf16.msra.mxu0 0
        %1360 = vmatprep.subr.bf16.mxu0 0
        %1361 = vmatpush1.bf16.msra.mxu0 0
        %1362 = vmatprep.subr.bf16.mxu0 0
        %1363 = vmatpush1.bf16.msra.mxu0 0
        %1364 = vmatprep.subr.bf16.mxu0 0
        %1365 = vmatpush1.bf16.msra.mxu0 0
        %1366 = vmatprep.subr.bf16.mxu0 0
        %1367 = vmatpush1.bf16.msra.mxu0 0
        %1368 = vmatprep.subr.bf16.mxu0 0
        %1369 = vmatpush1.bf16.msra.mxu0 0
        %1370 = vmatprep.subr.bf16.mxu0 0
        %1371 = vmatpush1.bf16.msra.mxu0 0
        %1372 = vmatprep.subr.bf16.mxu0 0
        %1373 = vmatpush1.bf16.msra.mxu0 0
        %1374 = vmatprep.subr.bf16.mxu0 0
        %1375 = vmatpush1.bf16.msra.mxu0 0
        %1376 = vmatprep.subr.bf16.mxu0 0
        %1377 = vmatpush1.bf16.msra.mxu0 0
        %1378 = vmatprep.subr.bf16.mxu0 0
        %1379 = vmatpush1.bf16.msra.mxu0 0
        %1380 = vmatprep.subr.bf16.mxu0 0
        %1381 = vmatpush1.bf16.msra.mxu0 0
        %1382 = vmatprep.subr.bf16.mxu0 0
        %1383 = vmatpush1.bf16.msra.mxu0 0
        %1384 = vmatprep.mubr.bf16.mxu0 0
        %1385 = vmatmul.mubr.bf16.gmra.mrb[0].mxu0 %v1350
        %v1386 = vpop.f32.mrb[0].mxu0
        %v1387 = vadd.f32 %v1335, %v1386
        %v1388 = vpop.f32.mrb[0].mxu0
        %v1389 = vpop.f32.mrb[0].mxu0
        %v1390 = vpop.f32.mrb[0].mxu0
        %1391 = vdwg.mxu0
        %v1392 = vadd.f32 %v763, %v1387
        %v1393 = vld [vmem:[%s3] sm:$0x1]
        %v1394 = vld [vmem:[%s4] sm:$0x1]
        %v1395 = vsel %vm766, %v1392, 0.0
        %1396 = vadd.xlane.f32.xlu0 %v1395
        %v1397 = vpop.xlane.xlu0 %1396
        %v1398 = vmul.f32 %v1397, %v770
        %v1399 = vsub.f32 %v1392, %v1398
        %v1400 = vmul.f32 %v1399, %v1399
        %v1401 = vsel %vm766, %v1400, 0.0
        %1402 = vadd.xlane.f32.xlu0 %v1401
        %v1403 = vpop.xlane.xlu0 %1402
        %v1404 = vmul.f32 %v1403, %v770
        %v1405 = vadd.f32 %v1404, 1e-05
        %v1406 = vrsqrt.pop %v1405
        %v1407 = vmul.f32 %v1399, %v1406
        %v1409 = vlaneseq
        %v1410 = vshrl.u32 %v1409, 7
        %v1411 = vsub.s32 0, %v1410
        %v1412 = vrot.slane %v1393, %v1411
        %v1414 = vmul.f32 %v1407, %v1412
        %v1416 = vlaneseq
        %v1417 = vshrl.u32 %v1416, 7
        %v1418 = vsub.s32 0, %v1417
        %v1419 = vrot.slane %v1394, %v1418
        %v1421 = vadd.f32 %v1414, %v1419
        %v1422 = vld [vmem:[%s734] sm:$0xff]
        %v1423 = vld [vmem:[%s734 + $0x8] sm:$0xff]
        %v1424 = vld [vmem:[%s734 + $0x10] sm:$0xff]
        %v1425 = vld [vmem:[%s734 + $0x18] sm:$0xff]
        %v1426 = vld [vmem:[%s737] sm:$0x1]
        %v1428 = vlaneseq
        %v1429 = vshrl.u32 %v1428, 7
        %v1430 = vsub.s32 0, %v1429
        %v1431 = vrot.slane %v1426, %v1430
        %v1434 = vsel %vm766, %v1421, 0
        %1436 = vmatprep.subr.mxu0 0.0
        %1437 = vmatpush1.msra.mxu0 %v1422
        %1438 = vmatprep.subr.mxu0 0.0
        %1439 = vmatpush1.msra.mxu0 %v1423
        %1440 = vmatprep.subr.mxu0 0.0
        %1441 = vmatpush1.msra.mxu0 %v1424
        %1442 = vmatprep.subr.mxu0 0.0
        %1443 = vmatpush1.msra.mxu0 %v1425
        %1444 = vmatprep.subr.mxu0 0.0
        %1445 = vmatpush1.msra.mxu0 0.0
        %1446 = vmatprep.subr.mxu0 0.0
        %1447 = vmatpush1.msra.mxu0 0.0
        %1448 = vmatprep.subr.mxu0 0.0
        %1449 = vmatpush1.msra.mxu0 0.0
        %1450 = vmatprep.subr.mxu0 0.0
        %1451 = vmatpush1.msra.mxu0 0.0
        %1452 = vmatprep.subr.mxu0 0.0
        %1453 = vmatpush1.msra.mxu0 0.0
        %1454 = vmatprep.subr.mxu0 0.0
        %1455 = vmatpush1.msra.mxu0 0.0
        %1456 = vmatprep.subr.mxu0 0.0
        %1457 = vmatpush1.msra.mxu0 0.0
        %1458 = vmatprep.subr.mxu0 0.0
        %1459 = vmatpush1.msra.mxu0 0.0
        %1460 = vmatprep.subr.mxu0 0.0
        %1461 = vmatpush1.msra.mxu0 0.0
        %1462 = vmatprep.subr.mxu0 0.0
        %1463 = vmatpush1.msra.mxu0 0.0
        %1464 = vmatprep.subr.mxu0 0.0
        %1465 = vmatpush1.msra.mxu0 0.0
        %1466 = vmatprep.subr.mxu0 0.0
        %1467 = vmatpush1.msra.mxu0 0.0
        %1468 = vmatprep.subr.mxu0 0.0
        %1469 = vmatpush1.msra.mxu0 0.0
        %1470 = vmatprep.subr.mxu0 0.0
        %1471 = vmatpush1.msra.mxu0 0.0
        %1472 = vmatprep.subr.mxu0 0.0
        %1473 = vmatpush1.msra.mxu0 0.0
        %1474 = vmatprep.subr.mxu0 0.0
        %1475 = vmatpush1.msra.mxu0 0.0
        %1476 = vmatprep.subr.mxu0 0.0
        %1477 = vmatpush1.msra.mxu0 0.0
        %1478 = vmatprep.subr.mxu0 0.0
        %1479 = vmatpush1.msra.mxu0 0.0
        %1480 = vmatprep.subr.mxu0 0.0
        %1481 = vmatpush1.msra.mxu0 0.0
        %1482 = vmatprep.subr.mxu0 0.0
        %1483 = vmatpush1.msra.mxu0 0.0
        %1484 = vmatprep.subr.mxu0 0.0
        %1485 = vmatpush1.msra.mxu0 0.0
        %1486 = vmatprep.subr.mxu0 0.0
        %1487 = vmatpush1.msra.mxu0 0.0
        %1488 = vmatprep.subr.mxu0 0.0
        %1489 = vmatpush1.msra.mxu0 0.0
        %1490 = vmatprep.subr.mxu0 0.0
        %1491 = vmatpush1.msra.mxu0 0.0
        %1492 = vmatprep.subr.mxu0 0.0
        %1493 = vmatpush1.msra.mxu0 0.0
        %1494 = vmatprep.subr.mxu0 0.0
        %1495 = vmatpush1.msra.mxu0 0.0
        %1496 = vmatprep.subr.mxu0 0.0
        %1497 = vmatpush1.msra.mxu0 0.0
        %1498 = vmatprep.subr.mxu0 0.0
        %1499 = vmatpush1.msra.mxu0 0.0
        %1500 = vmatprep.mubr.f32.mxu0 0.0
        %1501 = vmatmul.mubr.f32.gmra.mrb[0].mxu0 %v1434
        %v1502 = vpop.f32.mrb[0].mxu0
        %v1503 = vadd.f32 %v1431, %v1502
        %v1504 = vpop.f32.mrb[0].mxu0
        %1505 = vdwg.mxu0
        %v1506 = vlaneseq
        %v1507 = vand.u32 %v1506, 127
        %vm1508 = vcmask 31744
        %v1509 = vsel %vm1508, %v1503, -inf
        %1510 = vmax.xlane.f32.xlu0 %v1509
        %v1511 = vpop.xlane.xlu0 %1510
        %vm1512 = vcmp.eq.f32.partialorder %v1503, %v1511
        %v1513 = vsel %vm1512, %v1507, 4
        %v1514 = vsel %vm1508, %v1513, 2147483647
        %v1515 = vand.u32 %v1514, 65535
        %v1516 = vshra.s32 %v1514, 16
        %v1517 = vcvt.s32.f32 %v1515
        %v1518 = vcvt.s32.f32 %v1516
        %1519 = vmin.xlane.f32.xlu0 %v1518
        %v1520 = vpop.xlane.xlu0 %1519
        %vm1521 = vcmp.eq.f32.partialorder %v1518, %v1520
        %v1522 = vsel %vm1521, %v1517, inf
        %1523 = vmin.xlane.f32.xlu0 %v1522
        %v1524 = vpop.xlane.xlu0 %1523
        %v1525 = vcvt.f32.s32 %v1524
        %v1526 = vcvt.f32.s32 %v1520
        %v1527 = vshll.u32 %v1526, 16
        %v1528 = vadd.s32 %v1527, %v1525
        %vm1529 = vcmp.eq.s32.totalorder %v1507, %v1528
        %v1530 = vsel %vm1529, -inf, %v1503
        %v1531 = vsel %vm1508, %v1530, -inf
        %1532 = vmax.xlane.f32.xlu0 %v1531
        %v1533 = vpop.xlane.xlu0 %1532
        %vm1534 = vcmp.eq.f32.partialorder %v1530, %v1533
        %v1535 = vsel %vm1534, %v1507, 4
        %v1536 = vsel %vm1508, %v1535, 2147483647
        %v1537 = vand.u32 %v1536, 65535
        %v1538 = vshra.s32 %v1536, 16
        %v1539 = vcvt.s32.f32 %v1537
        %v1540 = vcvt.s32.f32 %v1538
        %1541 = vmin.xlane.f32.xlu0 %v1540
        %v1542 = vpop.xlane.xlu0 %1541
        %vm1543 = vcmp.eq.f32.partialorder %v1540, %v1542
        %v1544 = vsel %vm1543, %v1539, inf
        %1545 = vmin.xlane.f32.xlu0 %v1544
        %v1546 = vpop.xlane.xlu0 %1545
        %v1547 = vcvt.f32.s32 %v1546
        %v1548 = vcvt.f32.s32 %v1542
        %v1549 = vshll.u32 %v1548, 16
        %v1550 = vadd.s32 %v1549, %v1547
        %vm1551 = vcmp.eq.s32.totalorder %v1507, %v1550
        %v1552 = vsub.f32 %v1511, %v1511
        %v1553 = vmul.f32 %v1552, 1.442695
        %v1554 = vpow.pop %v1553
        %v1555 = vsub.f32 %v1533, %v1511
        %v1556 = vmul.f32 %v1555, 1.442695
        %v1557 = vpow.pop %v1556
        %v1558 = vadd.f32 %v1554, %v1557
        %v1559 = vsel %vm1529, 1, 0
        %v1560 = vcvt.s32.f32 %v1559
        %v1561 = vrcp.pop %v1558
        %v1562 = vmul.f32 %v1554, %v1561
        %v1563 = vmul.f32 %v1560, %v1562
        %v1564 = vadd.f32 %v1563, 0.0
        %v1565 = vsel %vm1551, 1, 0
        %v1566 = vcvt.s32.f32 %v1565
        %v1567 = vmul.f32 %v1557, %v1561
        %v1568 = vmul.f32 %v1566, %v1567
        %v1569 = vadd.f32 %v1564, %v1568
        %v1570 = vpack.c.bf16 %v1421, %v1421
        %v1571 = vld [vmem:[%s742] sm:$0xf]
        %v1572 = vld [vmem:[%s742 + $0x4] sm:$0xf]
        %v1573 = vld [vmem:[%s742 + $0x8] sm:$0xf]
        %v1574 = vld [vmem:[%s742 + $0xc] sm:$0xf]
        %v1575 = vld [vmem:[%s745] sm:$0x1]
        %v1577 = vlaneseq
        %v1578 = vshrl.u32 %v1577, 7
        %v1579 = vsub.s32 0, %v1578
        %v1580 = vrot.slane %v1575, %v1579
        %v1586 = vunpack.c.l.b16 %v1571
        %v1587 = vunpack.c.l.b16 %v1572
        %v1588 = vunpack.c.l.b16 %v1573
        %v1589 = vunpack.c.l.b16 %v1574
        %v1590 = vpack.c.b16 %v1587, %v1586
        %v1591 = vpack.c.b16 %v1589, %v1588
        %v1595 = vsel %vm766, %v1570, 0
        %1597 = vmatprep.subr.bf16.mxu0 0
        %1598 = vmatpush1.bf16.msra.mxu0 %v1590
        %1599 = vmatprep.subr.bf16.mxu0 0
        %1600 = vmatpush1.bf16.msra.mxu0 %v1591
        %1601 = vmatprep.subr.bf16.mxu0 0
        %1602 = vmatpush1.bf16.msra.mxu0 0
        %1603 = vmatprep.subr.bf16.mxu0 0
        %1604 = vmatpush1.bf16.msra.mxu0 0
        %1605 = vmatprep.subr.bf16.mxu0 0
        %1606 = vmatpush1.bf16.msra.mxu0 0
        %1607 = vmatprep.subr.bf16.mxu0 0
        %1608 = vmatpush1.bf16.msra.mxu0 0
        %1609 = vmatprep.subr.bf16.mxu0 0
        %1610 = vmatpush1.bf16.msra.mxu0 0
        %1611 = vmatprep.subr.bf16.mxu0 0
        %1612 = vmatpush1.bf16.msra.mxu0 0
        %1613 = vmatprep.subr.bf16.mxu0 0
        %1614 = vmatpush1.bf16.msra.mxu0 0
        %1615 = vmatprep.subr.bf16.mxu0 0
        %1616 = vmatpush1.bf16.msra.mxu0 0
        %1617 = vmatprep.subr.bf16.mxu0 0
        %1618 = vmatpush1.bf16.msra.mxu0 0
        %1619 = vmatprep.subr.bf16.mxu0 0
        %1620 = vmatpush1.bf16.msra.mxu0 0
        %1621 = vmatprep.subr.bf16.mxu0 0
        %1622 = vmatpush1.bf16.msra.mxu0 0
        %1623 = vmatprep.subr.bf16.mxu0 0
        %1624 = vmatpush1.bf16.msra.mxu0 0
        %1625 = vmatprep.subr.bf16.mxu0 0
        %1626 = vmatpush1.bf16.msra.mxu0 0
        %1627 = vmatprep.subr.bf16.mxu0 0
        %1628 = vmatpush1.bf16.msra.mxu0 0
        %1629 = vmatprep.mubr.bf16.mxu0 0
        %1630 = vmatmul.mubr.bf16.gmra.mrb[0].mxu0 %v1595
        %v1631 = vpop.f32.mrb[0].mxu0
        %v1632 = vadd.f32 %v1580, %v1631
        %v1633 = vpop.f32.mrb[0].mxu0
        %v1634 = vpop.f32.mrb[0].mxu0
        %v1635 = vpop.f32.mrb[0].mxu0
        %1636 = vdwg.mxu0
        %v1637 = vmul.f32 %v1632, 0.5
        %v1638 = vmul.f32 %v1632, 0.70710677
        %v1639 = vand.u32 2147483647, %v1638
        %v1640 = vmul.f32 %v1639, 0.3275911
        %v1641 = vadd.f32 %v1640, 1.0
        %v1642 = vrcp.pop %v1641
        %v1643 = vmul.f32 1.0, %v1642
        %v1644 = vmul.f32 %v1643, 1.0614054
        %v1645 = vadd.f32 %v1644, -1.4531521
        %v1646 = vmul.f32 %v1645, %v1643
        %v1647 = vadd.f32 %v1646, 1.4214138
        %v1648 = vmul.f32 %v1647, %v1643
        %v1649 = vadd.f32 %v1648, -0.28449672
        %v1650 = vmul.f32 %v1649, %v1643
        %v1651 = vadd.f32 %v1650, 0.2548296
        %v1652 = vmul.f32 %v1651, %v1643
        %v1653 = vsub.f32 0.0, %v1639
        %v1654 = vmul.f32 %v1653, %v1639
        %v1655 = vmul.f32 %v1654, 1.442695
        %v1656 = vpow.pop %v1655
        %v1657 = vmul.f32 %v1652, %v1656
        %v1658 = vsub.f32 1.0, %v1657
        %vm1659 = vcmp.ge.f32.partialorder %v1638, 0.0
        %v1660 = vsub.f32 0.0, %v1658
        %v1661 = vsel %vm1659, %v1658, %v1660
        %v1662 = vadd.f32 %v1661, 1.0
        %v1663 = vmul.f32 %v1637, %v1662
        %v1664 = vld [vmem:[%s15] sm:$0xf]
        %v1666 = vsel %vm1508, %v1569, 0
        %v1669 = vsel %vm931, %v1664, 0
        %1671 = vmatprep.subr.mxu0 0.0
        %1672 = vmatpush1.msra.mxu0 %v1669
        %1673 = vmatprep.subr.mxu0 0.0
        %1674 = vmatpush1.msra.mxu0 0.0
        %1675 = vmatprep.subr.mxu0 0.0
        %1676 = vmatpush1.msra.mxu0 0.0
        %1677 = vmatprep.subr.mxu0 0.0
        %1678 = vmatpush1.msra.mxu0 0.0
        %1679 = vmatprep.subr.mxu0 0.0
        %1680 = vmatpush1.msra.mxu0 0.0
        %1681 = vmatprep.subr.mxu0 0.0
        %1682 = vmatpush1.msra.mxu0 0.0
        %1683 = vmatprep.subr.mxu0 0.0
        %1684 = vmatpush1.msra.mxu0 0.0
        %1685 = vmatprep.subr.mxu0 0.0
        %1686 = vmatpush1.msra.mxu0 0.0
        %1687 = vmatprep.subr.mxu0 0.0
        %1688 = vmatpush1.msra.mxu0 0.0
        %1689 = vmatprep.subr.mxu0 0.0
        %1690 = vmatpush1.msra.mxu0 0.0
        %1691 = vmatprep.subr.mxu0 0.0
        %1692 = vmatpush1.msra.mxu0 0.0
        %1693 = vmatprep.subr.mxu0 0.0
        %1694 = vmatpush1.msra.mxu0 0.0
        %1695 = vmatprep.subr.mxu0 0.0
        %1696 = vmatpush1.msra.mxu0 0.0
        %1697 = vmatprep.subr.mxu0 0.0
        %1698 = vmatpush1.msra.mxu0 0.0
        %1699 = vmatprep.subr.mxu0 0.0
        %1700 = vmatpush1.msra.mxu0 0.0
        %1701 = vmatprep.subr.mxu0 0.0
        %1702 = vmatpush1.msra.mxu0 0.0
        %1703 = vmatprep.subr.mxu0 0.0
        %1704 = vmatpush1.msra.mxu0 0.0
        %1705 = vmatprep.subr.mxu0 0.0
        %1706 = vmatpush1.msra.mxu0 0.0
        %1707 = vmatprep.subr.mxu0 0.0
        %1708 = vmatpush1.msra.mxu0 0.0
        %1709 = vmatprep.subr.mxu0 0.0
        %1710 = vmatpush1.msra.mxu0 0.0
        %1711 = vmatprep.subr.mxu0 0.0
        %1712 = vmatpush1.msra.mxu0 0.0
        %1713 = vmatprep.subr.mxu0 0.0
        %1714 = vmatpush1.msra.mxu0 0.0
        %1715 = vmatprep.subr.mxu0 0.0
        %1716 = vmatpush1.msra.mxu0 0.0
        %1717 = vmatprep.subr.mxu0 0.0
        %1718 = vmatpush1.msra.mxu0 0.0
        %1719 = vmatprep.subr.mxu0 0.0
        %1720 = vmatpush1.msra.mxu0 0.0
        %1721 = vmatprep.subr.mxu0 0.0
        %1722 = vmatpush1.msra.mxu0 0.0
        %1723 = vmatprep.subr.mxu0 0.0
        %1724 = vmatpush1.msra.mxu0 0.0
        %1725 = vmatprep.subr.mxu0 0.0
        %1726 = vmatpush1.msra.mxu0 0.0
        %1727 = vmatprep.subr.mxu0 0.0
        %1728 = vmatpush1.msra.mxu0 0.0
        %1729 = vmatprep.subr.mxu0 0.0
        %1730 = vmatpush1.msra.mxu0 0.0
        %1731 = vmatprep.subr.mxu0 0.0
        %1732 = vmatpush1.msra.mxu0 0.0
        %1733 = vmatprep.subr.mxu0 0.0
        %1734 = vmatpush1.msra.mxu0 0.0
        %1735 = vmatprep.mubr.f32.mxu0 0.0
        %1736 = vmatmul.mubr.f32.gmra.mrb[0].mxu0 %v1666
        %v1737 = vpop.f32.mrb[0].mxu0
        %v1738 = vadd.f32 0.0, %v1737
        %v1739 = vpop.f32.mrb[0].mxu0
        %1740 = vdwg.mxu0
        %v1741 = vmul.f32 %v1663, %v1738
        %v1742 = vpack.c.bf16 %v1741, %v1741
        %v1743 = vld [vmem:[%s750] sm:$0xf]
        %v1744 = vld [vmem:[%s750 + $0x4] sm:$0xf]
        %v1745 = vld [vmem:[%s750 + $0x8] sm:$0xf]
        %v1746 = vld [vmem:[%s750 + $0xc] sm:$0xf]
        %v1747 = vld [vmem:[%s750 + $0x10] sm:$0xf]
        %v1748 = vld [vmem:[%s750 + $0x14] sm:$0xf]
        %v1749 = vld [vmem:[%s750 + $0x18] sm:$0xf]
        %v1750 = vld [vmem:[%s750 + $0x1c] sm:$0xf]
        %v1751 = vld [vmem:[%s750 + $0x20] sm:$0xf]
        %v1752 = vld [vmem:[%s750 + $0x24] sm:$0xf]
        %v1753 = vld [vmem:[%s750 + $0x28] sm:$0xf]
        %v1754 = vld [vmem:[%s750 + $0x2c] sm:$0xf]
        %v1755 = vld [vmem:[%s750 + $0x30] sm:$0xf]
        %v1756 = vld [vmem:[%s750 + $0x34] sm:$0xf]
        %v1757 = vld [vmem:[%s750 + $0x38] sm:$0xf]
        %v1758 = vld [vmem:[%s750 + $0x3c] sm:$0xf]
        %v1759 = vld [vmem:[%s754] sm:$0xf]
        %v1761 = vsel %vm931, %v1759, 0
        %1763 = vmatprep.subr.mxu0 0.0
        %1764 = vmatpush1.msra.mxu0 %v1761
        %1765 = vmatprep.subr.mxu0 0.0
        %1766 = vmatpush1.msra.mxu0 0.0
        %1767 = vmatprep.subr.mxu0 0.0
        %1768 = vmatpush1.msra.mxu0 0.0
        %1769 = vmatprep.subr.mxu0 0.0
        %1770 = vmatpush1.msra.mxu0 0.0
        %1771 = vmatprep.subr.mxu0 0.0
        %1772 = vmatpush1.msra.mxu0 0.0
        %1773 = vmatprep.subr.mxu0 0.0
        %1774 = vmatpush1.msra.mxu0 0.0
        %1775 = vmatprep.subr.mxu0 0.0
        %1776 = vmatpush1.msra.mxu0 0.0
        %1777 = vmatprep.subr.mxu0 0.0
        %1778 = vmatpush1.msra.mxu0 0.0
        %1779 = vmatprep.subr.mxu0 0.0
        %1780 = vmatpush1.msra.mxu0 0.0
        %1781 = vmatprep.subr.mxu0 0.0
        %1782 = vmatpush1.msra.mxu0 0.0
        %1783 = vmatprep.subr.mxu0 0.0
        %1784 = vmatpush1.msra.mxu0 0.0
        %1785 = vmatprep.subr.mxu0 0.0
        %1786 = vmatpush1.msra.mxu0 0.0
        %1787 = vmatprep.subr.mxu0 0.0
        %1788 = vmatpush1.msra.mxu0 0.0
        %1789 = vmatprep.subr.mxu0 0.0
        %1790 = vmatpush1.msra.mxu0 0.0
        %1791 = vmatprep.subr.mxu0 0.0
        %1792 = vmatpush1.msra.mxu0 0.0
        %1793 = vmatprep.subr.mxu0 0.0
        %1794 = vmatpush1.msra.mxu0 0.0
        %1795 = vmatprep.subr.mxu0 0.0
        %1796 = vmatpush1.msra.mxu0 0.0
        %1797 = vmatprep.subr.mxu0 0.0
        %1798 = vmatpush1.msra.mxu0 0.0
        %1799 = vmatprep.subr.mxu0 0.0
        %1800 = vmatpush1.msra.mxu0 0.0
        %1801 = vmatprep.subr.mxu0 0.0
        %1802 = vmatpush1.msra.mxu0 0.0
        %1803 = vmatprep.subr.mxu0 0.0
        %1804 = vmatpush1.msra.mxu0 0.0
        %1805 = vmatprep.subr.mxu0 0.0
        %1806 = vmatpush1.msra.mxu0 0.0
        %1807 = vmatprep.subr.mxu0 0.0
        %1808 = vmatpush1.msra.mxu0 0.0
        %1809 = vmatprep.subr.mxu0 0.0
        %1810 = vmatpush1.msra.mxu0 0.0
        %1811 = vmatprep.subr.mxu0 0.0
        %1812 = vmatpush1.msra.mxu0 0.0
        %1813 = vmatprep.subr.mxu0 0.0
        %1814 = vmatpush1.msra.mxu0 0.0
        %1815 = vmatprep.subr.mxu0 0.0
        %1816 = vmatpush1.msra.mxu0 0.0
        %1817 = vmatprep.subr.mxu0 0.0
        %1818 = vmatpush1.msra.mxu0 0.0
        %1819 = vmatprep.subr.mxu0 0.0
        %1820 = vmatpush1.msra.mxu0 0.0
        %1821 = vmatprep.subr.mxu0 0.0
        %1822 = vmatpush1.msra.mxu0 0.0
        %1823 = vmatprep.subr.mxu0 0.0
        %1824 = vmatpush1.msra.mxu0 0.0
        %1825 = vmatprep.subr.mxu0 0.0
        %1826 = vmatpush1.msra.mxu0 0.0
        %1827 = vmatprep.mubr.f32.mxu0 0.0
        %1828 = vmatmul.mubr.f32.gmra.mrb[0].mxu0 %v1666
        %v1829 = vpop.f32.mrb[0].mxu0
        %v1830 = vadd.f32 0.0, %v1829
        %v1831 = vpop.f32.mrb[0].mxu0
        %1832 = vdwg.mxu0
        %v1849 = vunpack.c.l.b16 %v1743
        %v1850 = vunpack.c.l.b16 %v1744
        %v1851 = vunpack.c.l.b16 %v1745
        %v1852 = vunpack.c.l.b16 %v1746
        %v1853 = vunpack.c.l.b16 %v1747
        %v1854 = vunpack.c.l.b16 %v1748
        %v1855 = vunpack.c.l.b16 %v1749
        %v1856 = vunpack.c.l.b16 %v1750
        %v1857 = vunpack.c.l.b16 %v1751
        %v1858 = vunpack.c.l.b16 %v1752
        %v1859 = vunpack.c.l.b16 %v1753
        %v1860 = vunpack.c.l.b16 %v1754
        %v1861 = vunpack.c.l.b16 %v1755
        %v1862 = vunpack.c.l.b16 %v1756
        %v1863 = vunpack.c.l.b16 %v1757
        %v1864 = vunpack.c.l.b16 %v1758
        %v1865 = vpack.c.b16 %v1850, %v1849
        %v1866 = vpack.c.b16 %v1852, %v1851
        %v1867 = vpack.c.b16 %v1854, %v1853
        %v1868 = vpack.c.b16 %v1856, %v1855
        %v1869 = vpack.c.b16 %v1858, %v1857
        %v1870 = vpack.c.b16 %v1860, %v1859
        %v1871 = vpack.c.b16 %v1862, %v1861
        %v1872 = vpack.c.b16 %v1864, %v1863
        %1881 = vmatprep.subr.bf16.mxu0 0
        %1882 = vmatpush1.bf16.msra.mxu0 %v1865
        %1883 = vmatprep.subr.bf16.mxu0 0
        %1884 = vmatpush1.bf16.msra.mxu0 %v1866
        %1885 = vmatprep.subr.bf16.mxu0 0
        %1886 = vmatpush1.bf16.msra.mxu0 %v1867
        %1887 = vmatprep.subr.bf16.mxu0 0
        %1888 = vmatpush1.bf16.msra.mxu0 %v1868
        %1889 = vmatprep.subr.bf16.mxu0 0
        %1890 = vmatpush1.bf16.msra.mxu0 %v1869
        %1891 = vmatprep.subr.bf16.mxu0 0
        %1892 = vmatpush1.bf16.msra.mxu0 %v1870
        %1893 = vmatprep.subr.bf16.mxu0 0
        %1894 = vmatpush1.bf16.msra.mxu0 %v1871
        %1895 = vmatprep.subr.bf16.mxu0 0
        %1896 = vmatpush1.bf16.msra.mxu0 %v1872
        %1897 = vmatprep.subr.bf16.mxu0 0
        %1898 = vmatpush1.bf16.msra.mxu0 0
        %1899 = vmatprep.subr.bf16.mxu0 0
        %1900 = vmatpush1.bf16.msra.mxu0 0
        %1901 = vmatprep.subr.bf16.mxu0 0
        %1902 = vmatpush1.bf16.msra.mxu0 0
        %1903 = vmatprep.subr.bf16.mxu0 0
        %1904 = vmatpush1.bf16.msra.mxu0 0
        %1905 = vmatprep.subr.bf16.mxu0 0
        %1906 = vmatpush1.bf16.msra.mxu0 0
        %1907 = vmatprep.subr.bf16.mxu0 0
        %1908 = vmatpush1.bf16.msra.mxu0 0
        %1909 = vmatprep.subr.bf16.mxu0 0
        %1910 = vmatpush1.bf16.msra.mxu0 0
        %1911 = vmatprep.subr.bf16.mxu0 0
        %1912 = vmatpush1.bf16.msra.mxu0 0
        %1913 = vmatprep.mubr.bf16.mxu0 0
        %1914 = vmatmul.mubr.bf16.gmra.mrb[0].mxu0 %v1742
        %v1915 = vpop.f32.mrb[0].mxu0
        %v1916 = vadd.f32 %v1830, %v1915
        %v1917 = vpop.f32.mrb[0].mxu0
        %v1918 = vpop.f32.mrb[0].mxu0
        %v1919 = vpop.f32.mrb[0].mxu0
        %1920 = vdwg.mxu0
        %v1921 = vadd.f32 %v1392, %v1916
        %1922 = vst.msk [vmem:[#allocation2] sm:$0xff] %vm766, %v1921
        %p1923 = scmp.eq.s32.totalorder %s37, 1
        // Predicated region
        $region97: #{moe_forward.1} parent=91 // pred_check
          %p1924 = pneg %p1923
        $region98: #{moe_forward.1} parent=91 // pred_check_branch
          %1926 = sbr.rel (%p1924) target = $region100
        $region99: #{moe_forward.1} parent=91 // pred_region
          %v1927 = vsel %vm766, %v1921, 0.0
          %v1928 = vrot.slane %v1927, 4
          %v1929 = vadd.f32 %v1927, %v1928
          %v1930 = vrot.slane %v1929, 2
          %v1931 = vadd.f32 %v1929, %v1930
          %v1932 = vrot.slane %v1931, 1
          %v1933 = vadd.f32 %v1931, %v1932
          %v1934 = vrcp.pop 8.0
          %v1935 = vmul.f32 %v1933, %v1934
          %v1936 = vpack.c.bf16 %v1935, %v1935
          %v1937 = vld [vmem:[%s16] sm:$0xf]
          %v1938 = vld [vmem:[%s16 + $0x4] sm:$0xf]
          %v1939 = vld [vmem:[%s16 + $0x8] sm:$0xf]
          %v1940 = vld [vmem:[%s16 + $0xc] sm:$0xf]
          %v1941 = vld [vmem:[%s17] sm:$0x1]
          %v1946 = vunpack.c.l.b16 %v1937
          %v1947 = vunpack.c.l.b16 %v1938
          %v1948 = vunpack.c.l.b16 %v1939
          %v1949 = vunpack.c.l.b16 %v1940
          %v1950 = vpack.c.b16 %v1947, %v1946
          %v1951 = vpack.c.b16 %v1949, %v1948
          %v1955 = vsel %vm766, %v1936, 0
          %1957 = vmatprep.subr.bf16.mxu0 0
          %1958 = vmatpush1.bf16.msra.mxu0 %v1950
          %1959 = vmatprep.subr.bf16.mxu0 0
          %1960 = vmatpush1.bf16.msra.mxu0 %v1951
          %1961 = vmatprep.subr.bf16.mxu0 0
          %1962 = vmatpush1.bf16.msra.mxu0 0
          %1963 = vmatprep.subr.bf16.mxu0 0
          %1964 = vmatpush1.bf16.msra.mxu0 0
          %1965 = vmatprep.subr.bf16.mxu0 0
          %1966 = vmatpush1.bf16.msra.mxu0 0
          %1967 = vmatprep.subr.bf16.mxu0 0
          %1968 = vmatpush1.bf16.msra.mxu0 0
          %1969 = vmatprep.subr.bf16.mxu0 0
          %1970 = vmatpush1.bf16.msra.mxu0 0
          %1971 = vmatprep.subr.bf16.mxu0 0
          %1972 = vmatpush1.bf16.msra.mxu0 0
          %1973 = vmatprep.subr.bf16.mxu0 0
          %1974 = vmatpush1.bf16.msra.mxu0 0
          %1975 = vmatprep.subr.bf16.mxu0 0
          %1976 = vmatpush1.bf16.msra.mxu0 0
          %1977 = vmatprep.subr.bf16.mxu0 0
          %1978 = vmatpush1.bf16.msra.mxu0 0
          %1979 = vmatprep.subr.bf16.mxu0 0
          %1980 = vmatpush1.bf16.msra.mxu0 0
          %1981 = vmatprep.subr.bf16.mxu0 0
          %1982 = vmatpush1.bf16.msra.mxu0 0
          %1983 = vmatprep.subr.bf16.mxu0 0
          %1984 = vmatpush1.bf16.msra.mxu0 0
          %1985 = vmatprep.subr.bf16.mxu0 0
          %1986 = vmatpush1.bf16.msra.mxu0 0
          %1987 = vmatprep.subr.bf16.mxu0 0
          %1988 = vmatpush1.bf16.msra.mxu0 0
          %1989 = vmatprep.mubr.bf16.mxu0 0
          %1990 = vmatmul.mubr.bf16.gmra.mrb[0].mxu0 %v1955
          %v1991 = vpop.f32.mrb[0].mxu0
          %v1992 = vadd.f32 %v1941, %v1991
          %v1993 = vpop.f32.mrb[0].mxu0
          %v1994 = vpop.f32.mrb[0].mxu0
          %v1995 = vpop.f32.mrb[0].mxu0
          %1996 = vdwg.mxu0
          %vm1997 = vcmask 73728
          %1998 = vst.msk [vmem:[%s709] sm:$0x1] %vm1997, %v1992
        $region100: #{moe_forward.1} parent=91 // pred_fallthru
          _
        %s1999 = sand.u32 %s485, 1
        %s2000 = scalar_lea.sflag [#allocation4], %s1999
        %s2001 = sand.u32 %s485, 1
        %s2002 = scalar_lea.vmem [#allocation3], %s2001
        // Predicated region
        $region101: #{moe_forward.1} parent=91 // pred_check
          %p2003 = pneg %p495
        $region102: #{moe_forward.1} parent=91 // pred_check_branch
          %2005 = sbr.rel (%p2003) target = $region104
        $region103: #{moe_forward.1} parent=91 // pred_region
          %s2007 = ssub.s32 16, 16
          %2008 = vsyncadd %s2000, %s2007
          %s2009 = smul.addr %s36, 16
          %s2010 = scalar_lea.hbm %s18, %s2009
          %s2012 = sshll.u32 %s2002, 4
          %s2013 = int_to_ptr.vmem [resolvable:$true] %s2012
          %2015 = dma.vmem_to_hbm [thread:$0]  %s2013, 16, %s2010, %s2000
        $region104: #{moe_forward.1} parent=91 // pred_fallthru
          _
      $region92: #{moe_forward.1} parent=5 // pred_fallthru
        _
      %p2016 = scmp.le.s32.totalorder 2, %s27
      // Predicated region
      $region105: #{moe_forward.1} parent=5 // pred_check
        %p2017 = pneg %p2016
      $region106: #{moe_forward.1} parent=5 // pred_check_branch
        %2019 = sbr.rel (%p2017) target = $region108
      $region107: #{moe_forward.1} parent=5 // pred_region
        %s2020 = ssub.s32 %s27, 2
        // Predicated region
        $region109: #{moe_forward.1} parent=107 // pred_check
          %p2021 = pneg %p501
        $region110: #{moe_forward.1} parent=107 // pred_check_branch
          %2023 = sbr.rel (%p2021) target = $region112
        $region111: #{moe_forward.1} parent=107 // pred_region
          %s2024 = sand.u32 %s486, 1
          %s2025 = scalar_lea.sflag [#allocation4], %s2024
          %s2026 = sand.u32 %s486, 1
          %s2027 = scalar_lea.vmem [#allocation3], %s2026
          %2028 = dma.done %s2025, 16
        $region112: #{moe_forward.1} parent=107 // pred_fallthru
          _
      $region108: #{moe_forward.1} parent=5 // pred_fallthru
        _
    $region6: #{moe_forward.1} parent=1 // loop_footer
      %s31 = sadd.s32 1, %s27
    $region7: #{moe_forward.1} parent=1 // loop_footer_branch
      %26 = sbr.rel target = $region3
    $region8: #{moe_forward.1} parent=1 // loop_exit
      _
    %2029 = vsyncpa [#allocation4], 1
    %s2030 = scalar_lea.sflag [#allocation4], 1
    %2031 = vsyncpa %s2030, 1

</llo_original>
